<compile_context>
chip_gen: v5e
topology: v5e:2x2
jax: 0.10.0
libtpu: 0.0.40
codegen_flags: <defaults>
</compile_context>

<pallas_src>
import math
import jax
import jax.numpy as jnp
from jax import lax
from jax.experimental import pallas as pl
from jax.experimental.pallas import tpu as pltpu


# -----------------------------------------------------------------------------
# Fused Pallas kernel: stacked LSTM layers + MLP head
# -----------------------------------------------------------------------------
def make_fused_kernel(num_layers, B, T, H, O):
    n_in = 1 + 3 * num_layers + 6  # x, per-layer (wih, whh, b), mlp (w1,b1,w2,b2,w3,b3)

    def kernel(*args):
        x_ref = args[0]
        layer_refs = [args[1 + 3 * l: 4 + 3 * l] for l in range(num_layers)]
        w1_ref, b1_ref, w2_ref, b2_ref, w3_ref, b3_ref = args[1 + 3 * num_layers: n_in]
        y_ref = args[n_in]
        gx_ref = args[n_in + 1]    # (B, T, 4H) gate pre-activations (input part)
        act_ref = args[n_in + 2]   # (B, T, H) layer output sequence

        F0 = x_ref.shape[-1]
        cur = x_ref[...].reshape(B * T, F0)   # batch-first flattened rows

        for l in range(num_layers):
            wih_ref, whh_ref, b_ref = layer_refs[l]

            # Hoisted input projection: one big lane-dense matmul (M = B*T,
            # N = 4H), bias folded in here, out of the hot recurrence.
            gx_ref[...] = (
                jnp.dot(cur, wih_ref[...], preferred_element_type=jnp.float32)
                + b_ref[...]
            ).reshape(B, T, 4 * H)

            whh = whh_ref[...]   # hoist: (H, 4H) stays live across time steps

            def step(t, carry):
                h, c = carry
                gx_t = gx_ref[:, pl.ds(t, 1), :].reshape(B, 4 * H)
                gates = gx_t + jnp.dot(h, whh, preferred_element_type=jnp.float32)
                # PyTorch gate order along the fused lane axis: i, f, g, o
                i = jax.nn.sigmoid(gates[:, 0 * H:1 * H])
                f = jax.nn.sigmoid(gates[:, 1 * H:2 * H])
                g = jnp.tanh(gates[:, 2 * H:3 * H])
                o = jax.nn.sigmoid(gates[:, 3 * H:4 * H])
                c = f * c + i * g
                h = o * jnp.tanh(c)
                act_ref[:, pl.ds(t, 1), :] = h.reshape(B, 1, H)
                return (h, c)

            zeros = jnp.zeros((B, H), jnp.float32)
            lax.fori_loop(0, T, step, (zeros, zeros), unroll=(T <= 32))

            cur = act_ref[...].reshape(B * T, H)

        # MLP head (dropout p=0.2 is identity in eval) on the VMEM-resident slab.
        h1 = jnp.maximum(
            jnp.dot(cur, w1_ref[...], preferred_element_type=jnp.float32)
            + b1_ref[...], 0.0)
        h2 = jnp.dot(h1, w2_ref[...], preferred_element_type=jnp.float32) + b2_ref[...]
        y = jnp.dot(h2, w3_ref[...], preferred_element_type=jnp.float32) + b3_ref[...]
        y_ref[...] = y.reshape(B, T, O)

    return kernel


# -----------------------------------------------------------------------------
# Wrapper
# -----------------------------------------------------------------------------
def lstm_model_forward(x_btf, params):
    """Full forward: x_btf (B, T, input_size) -> (B, T, output_size)."""
    B, T, _ = x_btf.shape
    num_layers = len(params["lstm"])
    H = params["lstm"][0]["whh"].shape[0]
    O = params["w3"].shape[1]

    flat_in = [x_btf]
    for layer in params["lstm"]:
        flat_in += [layer["wih"], layer["whh"], layer["b"]]
    flat_in += [params["w1"], params["b1"], params["w2"], params["b2"],
                params["w3"], params["b3"]]

    kernel = make_fused_kernel(num_layers, B, T, H, O)

    return pl.pallas_call(
        kernel,
        out_shape=jax.ShapeDtypeStruct((B, T, O), jnp.float32),
        in_specs=[pl.BlockSpec(memory_space=pltpu.MemorySpace.VMEM)
                  for _ in flat_in],
        out_specs=pl.BlockSpec(memory_space=pltpu.MemorySpace.VMEM),
        scratch_shapes=[
            pltpu.VMEM((B, T, 4 * H), jnp.float32),   # hoisted input projection
            pltpu.VMEM((B, T, H), jnp.float32),       # layer output sequence
        ],
    )(*flat_in)


# -----------------------------------------------------------------------------
# Deterministic parameter initialization (PyTorch-style uniform ranges),
# pre-packed for the fused-gate kernel layout.
# -----------------------------------------------------------------------------
def init_params(key, input_size, hidden_size, num_layers, output_size):
    params = {"lstm": []}
    k_lstm = 1.0 / math.sqrt(hidden_size)
    for layer in range(num_layers):
        in_dim = input_size if layer == 0 else hidden_size
        key, k1, k2, k3, k4 = jax.random.split(key, 5)
        w_ih = jax.random.uniform(k1, (4 * hidden_size, in_dim),
                                  minval=-k_lstm, maxval=k_lstm, dtype=jnp.float32)
        w_hh = jax.random.uniform(k2, (4 * hidden_size, hidden_size),
                                  minval=-k_lstm, maxval=k_lstm, dtype=jnp.float32)
        b_ih = jax.random.uniform(k3, (4 * hidden_size,),
                                  minval=-k_lstm, maxval=k_lstm, dtype=jnp.float32)
        b_hh = jax.random.uniform(k4, (4 * hidden_size,),
                                  minval=-k_lstm, maxval=k_lstm, dtype=jnp.float32)
        # Fused lane-dense layout: (in_dim, 4H) / (H, 4H), bias (1, 4H).
        # Column blocks keep the PyTorch gate order i, f, g, o.
        params["lstm"].append({
            "wih": jnp.transpose(w_ih),                       # (in_dim, 4H)
            "whh": jnp.transpose(w_hh),                       # (H, 4H)
            "b": (b_ih + b_hh).reshape(1, 4 * hidden_size),   # (1, 4H)
        })

    def linear(key, fan_in, fan_out):
        k = 1.0 / math.sqrt(fan_in)
        kw, kb = jax.random.split(key)
        w = jax.random.uniform(kw, (fan_in, fan_out), minval=-k, maxval=k,
                               dtype=jnp.float32)
        b = jax.random.uniform(kb, (1, fan_out), minval=-k, maxval=k,
                               dtype=jnp.float32)
        return w, b

    key, kl1, kl2, kl3 = jax.random.split(key, 4)
    params["w1"], params["b1"] = linear(kl1, hidden_size, 64)
    params["w2"], params["b2"] = linear(kl2, 64, 32)
    params["w3"], params["b3"] = linear(kl3, 32, output_size)
    return params


# -----------------------------------------------------------------------------
# Pure-JAX reference (for correctness check)
# -----------------------------------------------------------------------------
def reference_forward(x_btf, params):
    x = jnp.transpose(x_btf, (1, 0, 2))  # time-major (T, B, F)
    for layer in params["lstm"]:
        B = x.shape[1]
        H = layer["whh"].shape[0]

        def step(carry, x_t):
            h, c = carry
            gates = (jnp.dot(x_t, layer["wih"]) + jnp.dot(h, layer["whh"])
                     + layer["b"])
            i = jax.nn.sigmoid(gates[:, 0 * H:1 * H])
            f = jax.nn.sigmoid(gates[:, 1 * H:2 * H])
            g = jnp.tanh(gates[:, 2 * H:3 * H])
            o = jax.nn.sigmoid(gates[:, 3 * H:4 * H])
            c = f * c + i * g
            h = o * jnp.tanh(c)
            return (h, c), h

        init = (jnp.zeros((B, H), jnp.float32), jnp.zeros((B, H), jnp.float32))
        _, x = lax.scan(step, init, x)
    h1 = jnp.maximum(jnp.dot(x, params["w1"]) + params["b1"], 0.0)
    h2 = jnp.dot(h1, params["w2"]) + params["b2"]
    y = jnp.dot(h2, params["w3"]) + params["b3"]
    return jnp.transpose(y, (1, 0, 2))


# -----------------------------------------------------------------------------
if __name__ == "__main__":
    # Small shapes consistent with the module's forward pass.
    batch, seq_len = 2, 8
    input_size, hidden_size, num_layers, output_size = 4, 32, 2, 1

    key = jax.random.PRNGKey(0)
    key_x, key_p = jax.random.split(key)
    x = jax.random.normal(key_x, (batch, seq_len, input_size), dtype=jnp.float32)
    params = init_params(key_p, input_size, hidden_size, num_layers, output_size)

    out = lstm_model_forward(x, params)
    out = jax.block_until_ready(out)

    ref = jax.block_until_ready(reference_forward(x, params))
    assert out.shape == (batch, seq_len, output_size)
    assert jnp.allclose(out, ref, atol=1e-4, rtol=1e-4), "Pallas output mismatch"

    print("KERNEL_OK")
</pallas_src>

<mosaic_0001>
module attributes {stable_mosaic.version = 11 : i64} {
  func.func @kernel(%arg0: memref<2x8x4xf32, #tpu.memory_space<vmem>>, %arg1: memref<4x128xf32, #tpu.memory_space<vmem>>, %arg2: memref<32x128xf32, #tpu.memory_space<vmem>>, %arg3: memref<1x128xf32, #tpu.memory_space<vmem>>, %arg4: memref<32x128xf32, #tpu.memory_space<vmem>>, %arg5: memref<32x128xf32, #tpu.memory_space<vmem>>, %arg6: memref<1x128xf32, #tpu.memory_space<vmem>>, %arg7: memref<32x64xf32, #tpu.memory_space<vmem>>, %arg8: memref<1x64xf32, #tpu.memory_space<vmem>>, %arg9: memref<64x32xf32, #tpu.memory_space<vmem>>, %arg10: memref<1x32xf32, #tpu.memory_space<vmem>>, %arg11: memref<32x1xf32, #tpu.memory_space<vmem>>, %arg12: memref<1x1xf32, #tpu.memory_space<vmem>>, %arg13: memref<2x8x1xf32, #tpu.memory_space<vmem>>, %arg14: memref<2x8x128xf32, #tpu.memory_space<vmem>>, %arg15: memref<2x8x32xf32, #tpu.memory_space<vmem>>) attributes {dimension_semantics = [], scalar_prefetch = 0 : i64, scratch_operands = 2 : i64, tpu.core_type = #tpu.core_type<tc>} {
    %c0 = arith.constant 0 : index
    %c0_0 = arith.constant 0 : index
    %c0_1 = arith.constant 0 : index
    %0 = vector.load %arg0[%c0, %c0_0, %c0_1] : memref<2x8x4xf32, #tpu.memory_space<vmem>>, vector<2x8x4xf32>
    %1 = vector.shape_cast %0 : vector<2x8x4xf32> to vector<16x4xf32>
    %c0_2 = arith.constant 0 : index
    %c0_3 = arith.constant 0 : index
    %2 = vector.load %arg1[%c0_2, %c0_3] : memref<4x128xf32, #tpu.memory_space<vmem>>, vector<4x128xf32>
    %cst = arith.constant dense<0.000000e+00> : vector<16x128xf32>
    %3 = tpu.matmul %1, %2, %cst {dimension_numbers = #tpu.dot_dimension_numbers<[1], [0], [0], [1], [0, 0, 1, 1], [], []>} : vector<16x4xf32>, vector<4x128xf32>, vector<16x128xf32> -> vector<16x128xf32>
    %c0_4 = arith.constant 0 : index
    %c0_5 = arith.constant 0 : index
    %4 = vector.load %arg3[%c0_4, %c0_5] : memref<1x128xf32, #tpu.memory_space<vmem>>, vector<1x128xf32>
    %5 = vector.broadcast %4 : vector<1x128xf32> to vector<16x128xf32>
    %6 = arith.addf %3, %5 : vector<16x128xf32>
    %7 = vector.shape_cast %6 : vector<16x128xf32> to vector<2x8x128xf32>
    %c0_6 = arith.constant 0 : index
    %c0_7 = arith.constant 0 : index
    %c0_8 = arith.constant 0 : index
    %8 = vector.load %arg14[%c0_6, %c0_7, %c0_8] : memref<2x8x128xf32, #tpu.memory_space<vmem>>, vector<2x8x128xf32>
    tpu.vector_store %arg14[%c0_6, %c0_7, %c0_8], %7 {strides = array<i32>} : memref<2x8x128xf32, #tpu.memory_space<vmem>>, vector<2x8x128xf32>,
    %c0_9 = arith.constant 0 : index
    %c0_10 = arith.constant 0 : index
    %9 = vector.load %arg2[%c0_9, %c0_10] : memref<32x128xf32, #tpu.memory_space<vmem>>, vector<32x128xf32>
    %cst_11 = arith.constant 0.000000e+00 : f32
    %10 = vector.broadcast %cst_11 : f32 to vector<2x32xf32>
    %c0_i32 = arith.constant 0 : i32
    %c0_12 = arith.constant 0 : index
    %11 = arith.index_cast %c0_i32 : i32 to index
    %c0_13 = arith.constant 0 : index
    %12 = vector.load %arg14[%c0_12, %11, %c0_13] : memref<2x8x128xf32, #tpu.memory_space<vmem>>, vector<2x1x128xf32>
    %13 = vector.shape_cast %12 : vector<2x1x128xf32> to vector<2x128xf32>
    %cst_14 = arith.constant dense<0.000000e+00> : vector<2x128xf32>
    %14 = tpu.matmul %10, %9, %cst_14 {dimension_numbers = #tpu.dot_dimension_numbers<[1], [0], [0], [1], [0, 0, 1, 1], [], []>} : vector<2x32xf32>, vector<32x128xf32>, vector<2x128xf32> -> vector<2x128xf32>
    %15 = arith.addf %13, %14 : vector<2x128xf32>
    %16 = vector.extract_strided_slice %15 {offsets = [0, 0], sizes = [2, 32], strides = [1, 1]} : vector<2x128xf32> to vector<2x32xf32>
    %17 = arith.negf %16 : vector<2x32xf32>
    %18 = math.exp %17 : vector<2x32xf32>
    %cst_15 = arith.constant 1.000000e+00 : f32
    %19 = vector.broadcast %cst_15 : f32 to vector<2x32xf32>
    %20 = arith.addf %19, %18 : vector<2x32xf32>
    %21 = arith.divf %19, %20 : vector<2x32xf32>
    %22 = vector.extract_strided_slice %15 {offsets = [0, 32], sizes = [2, 32], strides = [1, 1]} : vector<2x128xf32> to vector<2x32xf32>
    %23 = arith.negf %22 : vector<2x32xf32>
    %24 = math.exp %23 : vector<2x32xf32>
    %cst_16 = arith.constant 1.000000e+00 : f32
    %25 = vector.broadcast %cst_16 : f32 to vector<2x32xf32>
    %26 = arith.addf %25, %24 : vector<2x32xf32>
    %27 = arith.divf %25, %26 : vector<2x32xf32>
    %28 = vector.extract_strided_slice %15 {offsets = [0, 64], sizes = [2, 32], strides = [1, 1]} : vector<2x128xf32> to vector<2x32xf32>
    %29 = math.tanh %28 : vector<2x32xf32>
    %30 = vector.extract_strided_slice %15 {offsets = [0, 96], sizes = [2, 32], strides = [1, 1]} : vector<2x128xf32> to vector<2x32xf32>
    %31 = arith.negf %30 : vector<2x32xf32>
    %32 = math.exp %31 : vector<2x32xf32>
    %cst_17 = arith.constant 1.000000e+00 : f32
    %33 = vector.broadcast %cst_17 : f32 to vector<2x32xf32>
    %34 = arith.addf %33, %32 : vector<2x32xf32>
    %35 = arith.divf %33, %34 : vector<2x32xf32>
    %36 = arith.mulf %27, %10 : vector<2x32xf32>
    %37 = arith.mulf %21, %29 : vector<2x32xf32>
    %38 = arith.addf %36, %37 : vector<2x32xf32>
    %39 = math.tanh %38 : vector<2x32xf32>
    %40 = arith.mulf %35, %39 : vector<2x32xf32>
    %41 = vector.shape_cast %40 : vector<2x32xf32> to vector<2x1x32xf32>
    %c0_18 = arith.constant 0 : index
    %42 = arith.index_cast %c0_i32 : i32 to index
    %c0_19 = arith.constant 0 : index
    %43 = vector.load %arg15[%c0_18, %42, %c0_19] : memref<2x8x32xf32, #tpu.memory_space<vmem>>, vector<2x1x32xf32>
    tpu.vector_store %arg15[%c0_18, %42, %c0_19], %41 {strides = array<i32>} : memref<2x8x32xf32, #tpu.memory_space<vmem>>, vector<2x1x32xf32>,
    %c1_i32 = arith.constant 1 : i32
    %c0_20 = arith.constant 0 : index
    %44 = arith.index_cast %c1_i32 : i32 to index
    %c0_21 = arith.constant 0 : index
    %45 = vector.load %arg14[%c0_20, %44, %c0_21] : memref<2x8x128xf32, #tpu.memory_space<vmem>>, vector<2x1x128xf32>
    %46 = vector.shape_cast %45 : vector<2x1x128xf32> to vector<2x128xf32>
    %cst_22 = arith.constant dense<0.000000e+00> : vector<2x128xf32>
    %47 = tpu.matmul %40, %9, %cst_22 {dimension_numbers = #tpu.dot_dimension_numbers<[1], [0], [0], [1], [0, 0, 1, 1], [], []>} : vector<2x32xf32>, vector<32x128xf32>, vector<2x128xf32> -> vector<2x128xf32>
    %48 = arith.addf %46, %47 : vector<2x128xf32>
    %49 = vector.extract_strided_slice %48 {offsets = [0, 0], sizes = [2, 32], strides = [1, 1]} : vector<2x128xf32> to vector<2x32xf32>
    %50 = arith.negf %49 : vector<2x32xf32>
    %51 = math.exp %50 : vector<2x32xf32>
    %cst_23 = arith.constant 1.000000e+00 : f32
    %52 = vector.broadcast %cst_23 : f32 to vector<2x32xf32>
    %53 = arith.addf %52, %51 : vector<2x32xf32>
    %54 = arith.divf %52, %53 : vector<2x32xf32>
    %55 = vector.extract_strided_slice %48 {offsets = [0, 32], sizes = [2, 32], strides = [1, 1]} : vector<2x128xf32> to vector<2x32xf32>
    %56 = arith.negf %55 : vector<2x32xf32>
    %57 = math.exp %56 : vector<2x32xf32>
    %cst_24 = arith.constant 1.000000e+00 : f32
    %58 = vector.broadcast %cst_24 : f32 to vector<2x32xf32>
    %59 = arith.addf %58, %57 : vector<2x32xf32>
    %60 = arith.divf %58, %59 : vector<2x32xf32>
    %61 = vector.extract_strided_slice %48 {offsets = [0, 64], sizes = [2, 32], strides = [1, 1]} : vector<2x128xf32> to vector<2x32xf32>
    %62 = math.tanh %61 : vector<2x32xf32>
    %63 = vector.extract_strided_slice %48 {offsets = [0, 96], sizes = [2, 32], strides = [1, 1]} : vector<2x128xf32> to vector<2x32xf32>
    %64 = arith.negf %63 : vector<2x32xf32>
    %65 = math.exp %64 : vector<2x32xf32>
    %cst_25 = arith.constant 1.000000e+00 : f32
    %66 = vector.broadcast %cst_25 : f32 to vector<2x32xf32>
    %67 = arith.addf %66, %65 : vector<2x32xf32>
    %68 = arith.divf %66, %67 : vector<2x32xf32>
    %69 = arith.mulf %60, %38 : vector<2x32xf32>
    %70 = arith.mulf %54, %62 : vector<2x32xf32>
    %71 = arith.addf %69, %70 : vector<2x32xf32>
    %72 = math.tanh %71 : vector<2x32xf32>
    %73 = arith.mulf %68, %72 : vector<2x32xf32>
    %74 = vector.shape_cast %73 : vector<2x32xf32> to vector<2x1x32xf32>
    %c0_26 = arith.constant 0 : index
    %75 = arith.index_cast %c1_i32 : i32 to index
    %c0_27 = arith.constant 0 : index
    %76 = vector.load %arg15[%c0_26, %75, %c0_27] : memref<2x8x32xf32, #tpu.memory_space<vmem>>, vector<2x1x32xf32>
    tpu.vector_store %arg15[%c0_26, %75, %c0_27], %74 {strides = array<i32>} : memref<2x8x32xf32, #tpu.memory_space<vmem>>, vector<2x1x32xf32>,
    %c2_i32 = arith.constant 2 : i32
    %c0_28 = arith.constant 0 : index
    %77 = arith.index_cast %c2_i32 : i32 to index
    %c0_29 = arith.constant 0 : index
    %78 = vector.load %arg14[%c0_28, %77, %c0_29] : memref<2x8x128xf32, #tpu.memory_space<vmem>>, vector<2x1x128xf32>
    %79 = vector.shape_cast %78 : vector<2x1x128xf32> to vector<2x128xf32>
    %cst_30 = arith.constant dense<0.000000e+00> : vector<2x128xf32>
    %80 = tpu.matmul %73, %9, %cst_30 {dimension_numbers = #tpu.dot_dimension_numbers<[1], [0], [0], [1], [0, 0, 1, 1], [], []>} : vector<2x32xf32>, vector<32x128xf32>, vector<2x128xf32> -> vector<2x128xf32>
    %81 = arith.addf %79, %80 : vector<2x128xf32>
    %82 = vector.extract_strided_slice %81 {offsets = [0, 0], sizes = [2, 32], strides = [1, 1]} : vector<2x128xf32> to vector<2x32xf32>
    %83 = arith.negf %82 : vector<2x32xf32>
    %84 = math.exp %83 : vector<2x32xf32>
    %cst_31 = arith.constant 1.000000e+00 : f32
    %85 = vector.broadcast %cst_31 : f32 to vector<2x32xf32>
    %86 = arith.addf %85, %84 : vector<2x32xf32>
    %87 = arith.divf %85, %86 : vector<2x32xf32>
    %88 = vector.extract_strided_slice %81 {offsets = [0, 32], sizes = [2, 32], strides = [1, 1]} : vector<2x128xf32> to vector<2x32xf32>
    %89 = arith.negf %88 : vector<2x32xf32>
    %90 = math.exp %89 : vector<2x32xf32>
    %cst_32 = arith.constant 1.000000e+00 : f32
    %91 = vector.broadcast %cst_32 : f32 to vector<2x32xf32>
    %92 = arith.addf %91, %90 : vector<2x32xf32>
    %93 = arith.divf %91, %92 : vector<2x32xf32>
    %94 = vector.extract_strided_slice %81 {offsets = [0, 64], sizes = [2, 32], strides = [1, 1]} : vector<2x128xf32> to vector<2x32xf32>
    %95 = math.tanh %94 : vector<2x32xf32>
    %96 = vector.extract_strided_slice %81 {offsets = [0, 96], sizes = [2, 32], strides = [1, 1]} : vector<2x128xf32> to vector<2x32xf32>
    %97 = arith.negf %96 : vector<2x32xf32>
    %98 = math.exp %97 : vector<2x32xf32>
    %cst_33 = arith.constant 1.000000e+00 : f32
    %99 = vector.broadcast %cst_33 : f32 to vector<2x32xf32>
    %100 = arith.addf %99, %98 : vector<2x32xf32>
    %101 = arith.divf %99, %100 : vector<2x32xf32>
    %102 = arith.mulf %93, %71 : vector<2x32xf32>
    %103 = arith.mulf %87, %95 : vector<2x32xf32>
    %104 = arith.addf %102, %103 : vector<2x32xf32>
    %105 = math.tanh %104 : vector<2x32xf32>
    %106 = arith.mulf %101, %105 : vector<2x32xf32>
    %107 = vector.shape_cast %106 : vector<2x32xf32> to vector<2x1x32xf32>
    %c0_34 = arith.constant 0 : index
    %108 = arith.index_cast %c2_i32 : i32 to index
    %c0_35 = arith.constant 0 : index
    %109 = vector.load %arg15[%c0_34, %108, %c0_35] : memref<2x8x32xf32, #tpu.memory_space<vmem>>, vector<2x1x32xf32>
    tpu.vector_store %arg15[%c0_34, %108, %c0_35], %107 {strides = array<i32>} : memref<2x8x32xf32, #tpu.memory_space<vmem>>, vector<2x1x32xf32>,
    %c3_i32 = arith.constant 3 : i32
    %c0_36 = arith.constant 0 : index
    %110 = arith.index_cast %c3_i32 : i32 to index
    %c0_37 = arith.constant 0 : index
    %111 = vector.load %arg14[%c0_36, %110, %c0_37] : memref<2x8x128xf32, #tpu.memory_space<vmem>>, vector<2x1x128xf32>
    %112 = vector.shape_cast %111 : vector<2x1x128xf32> to vector<2x128xf32>
    %cst_38 = arith.constant dense<0.000000e+00> : vector<2x128xf32>
    %113 = tpu.matmul %106, %9, %cst_38 {dimension_numbers = #tpu.dot_dimension_numbers<[1], [0], [0], [1], [0, 0, 1, 1], [], []>} : vector<2x32xf32>, vector<32x128xf32>, vector<2x128xf32> -> vector<2x128xf32>
    %114 = arith.addf %112, %113 : vector<2x128xf32>
    %115 = vector.extract_strided_slice %114 {offsets = [0, 0], sizes = [2, 32], strides = [1, 1]} : vector<2x128xf32> to vector<2x32xf32>
    %116 = arith.negf %115 : vector<2x32xf32>
    %117 = math.exp %116 : vector<2x32xf32>
    %cst_39 = arith.constant 1.000000e+00 : f32
    %118 = vector.broadcast %cst_39 : f32 to vector<2x32xf32>
    %119 = arith.addf %118, %117 : vector<2x32xf32>
    %120 = arith.divf %118, %119 : vector<2x32xf32>
    %121 = vector.extract_strided_slice %114 {offsets = [0, 32], sizes = [2, 32], strides = [1, 1]} : vector<2x128xf32> to vector<2x32xf32>
    %122 = arith.negf %121 : vector<2x32xf32>
    %123 = math.exp %122 : vector<2x32xf32>
    %cst_40 = arith.constant 1.000000e+00 : f32
    %124 = vector.broadcast %cst_40 : f32 to vector<2x32xf32>
    %125 = arith.addf %124, %123 : vector<2x32xf32>
    %126 = arith.divf %124, %125 : vector<2x32xf32>
    %127 = vector.extract_strided_slice %114 {offsets = [0, 64], sizes = [2, 32], strides = [1, 1]} : vector<2x128xf32> to vector<2x32xf32>
    %128 = math.tanh %127 : vector<2x32xf32>
    %129 = vector.extract_strided_slice %114 {offsets = [0, 96], sizes = [2, 32], strides = [1, 1]} : vector<2x128xf32> to vector<2x32xf32>
    %130 = arith.negf %129 : vector<2x32xf32>
    %131 = math.exp %130 : vector<2x32xf32>
    %cst_41 = arith.constant 1.000000e+00 : f32
    %132 = vector.broadcast %cst_41 : f32 to vector<2x32xf32>
    %133 = arith.addf %132, %131 : vector<2x32xf32>
    %134 = arith.divf %132, %133 : vector<2x32xf32>
    %135 = arith.mulf %126, %104 : vector<2x32xf32>
    %136 = arith.mulf %120, %128 : vector<2x32xf32>
    %137 = arith.addf %135, %136 : vector<2x32xf32>
    %138 = math.tanh %137 : vector<2x32xf32>
    %139 = arith.mulf %134, %138 : vector<2x32xf32>
    %140 = vector.shape_cast %139 : vector<2x32xf32> to vector<2x1x32xf32>
    %c0_42 = arith.constant 0 : index
    %141 = arith.index_cast %c3_i32 : i32 to index
    %c0_43 = arith.constant 0 : index
    %142 = vector.load %arg15[%c0_42, %141, %c0_43] : memref<2x8x32xf32, #tpu.memory_space<vmem>>, vector<2x1x32xf32>
    tpu.vector_store %arg15[%c0_42, %141, %c0_43], %140 {strides = array<i32>} : memref<2x8x32xf32, #tpu.memory_space<vmem>>, vector<2x1x32xf32>,
    %c4_i32 = arith.constant 4 : i32
    %c0_44 = arith.constant 0 : index
    %143 = arith.index_cast %c4_i32 : i32 to index
    %c0_45 = arith.constant 0 : index
    %144 = vector.load %arg14[%c0_44, %143, %c0_45] : memref<2x8x128xf32, #tpu.memory_space<vmem>>, vector<2x1x128xf32>
    %145 = vector.shape_cast %144 : vector<2x1x128xf32> to vector<2x128xf32>
    %cst_46 = arith.constant dense<0.000000e+00> : vector<2x128xf32>
    %146 = tpu.matmul %139, %9, %cst_46 {dimension_numbers = #tpu.dot_dimension_numbers<[1], [0], [0], [1], [0, 0, 1, 1], [], []>} : vector<2x32xf32>, vector<32x128xf32>, vector<2x128xf32> -> vector<2x128xf32>
    %147 = arith.addf %145, %146 : vector<2x128xf32>
    %148 = vector.extract_strided_slice %147 {offsets = [0, 0], sizes = [2, 32], strides = [1, 1]} : vector<2x128xf32> to vector<2x32xf32>
    %149 = arith.negf %148 : vector<2x32xf32>
    %150 = math.exp %149 : vector<2x32xf32>
    %cst_47 = arith.constant 1.000000e+00 : f32
    %151 = vector.broadcast %cst_47 : f32 to vector<2x32xf32>
    %152 = arith.addf %151, %150 : vector<2x32xf32>
    %153 = arith.divf %151, %152 : vector<2x32xf32>
    %154 = vector.extract_strided_slice %147 {offsets = [0, 32], sizes = [2, 32], strides = [1, 1]} : vector<2x128xf32> to vector<2x32xf32>
    %155 = arith.negf %154 : vector<2x32xf32>
    %156 = math.exp %155 : vector<2x32xf32>
    %cst_48 = arith.constant 1.000000e+00 : f32
    %157 = vector.broadcast %cst_48 : f32 to vector<2x32xf32>
    %158 = arith.addf %157, %156 : vector<2x32xf32>
    %159 = arith.divf %157, %158 : vector<2x32xf32>
    %160 = vector.extract_strided_slice %147 {offsets = [0, 64], sizes = [2, 32], strides = [1, 1]} : vector<2x128xf32> to vector<2x32xf32>
    %161 = math.tanh %160 : vector<2x32xf32>
    %162 = vector.extract_strided_slice %147 {offsets = [0, 96], sizes = [2, 32], strides = [1, 1]} : vector<2x128xf32> to vector<2x32xf32>
    %163 = arith.negf %162 : vector<2x32xf32>
    %164 = math.exp %163 : vector<2x32xf32>
    %cst_49 = arith.constant 1.000000e+00 : f32
    %165 = vector.broadcast %cst_49 : f32 to vector<2x32xf32>
    %166 = arith.addf %165, %164 : vector<2x32xf32>
    %167 = arith.divf %165, %166 : vector<2x32xf32>
    %168 = arith.mulf %159, %137 : vector<2x32xf32>
    %169 = arith.mulf %153, %161 : vector<2x32xf32>
    %170 = arith.addf %168, %169 : vector<2x32xf32>
    %171 = math.tanh %170 : vector<2x32xf32>
    %172 = arith.mulf %167, %171 : vector<2x32xf32>
    %173 = vector.shape_cast %172 : vector<2x32xf32> to vector<2x1x32xf32>
    %c0_50 = arith.constant 0 : index
    %174 = arith.index_cast %c4_i32 : i32 to index
    %c0_51 = arith.constant 0 : index
    %175 = vector.load %arg15[%c0_50, %174, %c0_51] : memref<2x8x32xf32, #tpu.memory_space<vmem>>, vector<2x1x32xf32>
    tpu.vector_store %arg15[%c0_50, %174, %c0_51], %173 {strides = array<i32>} : memref<2x8x32xf32, #tpu.memory_space<vmem>>, vector<2x1x32xf32>,
    %c5_i32 = arith.constant 5 : i32
    %c0_52 = arith.constant 0 : index
    %176 = arith.index_cast %c5_i32 : i32 to index
    %c0_53 = arith.constant 0 : index
    %177 = vector.load %arg14[%c0_52, %176, %c0_53] : memref<2x8x128xf32, #tpu.memory_space<vmem>>, vector<2x1x128xf32>
    %178 = vector.shape_cast %177 : vector<2x1x128xf32> to vector<2x128xf32>
    %cst_54 = arith.constant dense<0.000000e+00> : vector<2x128xf32>
    %179 = tpu.matmul %172, %9, %cst_54 {dimension_numbers = #tpu.dot_dimension_numbers<[1], [0], [0], [1], [0, 0, 1, 1], [], []>} : vector<2x32xf32>, vector<32x128xf32>, vector<2x128xf32> -> vector<2x128xf32>
    %180 = arith.addf %178, %179 : vector<2x128xf32>
    %181 = vector.extract_strided_slice %180 {offsets = [0, 0], sizes = [2, 32], strides = [1, 1]} : vector<2x128xf32> to vector<2x32xf32>
    %182 = arith.negf %181 : vector<2x32xf32>
    %183 = math.exp %182 : vector<2x32xf32>
    %cst_55 = arith.constant 1.000000e+00 : f32
    %184 = vector.broadcast %cst_55 : f32 to vector<2x32xf32>
    %185 = arith.addf %184, %183 : vector<2x32xf32>
    %186 = arith.divf %184, %185 : vector<2x32xf32>
    %187 = vector.extract_strided_slice %180 {offsets = [0, 32], sizes = [2, 32], strides = [1, 1]} : vector<2x128xf32> to vector<2x32xf32>
    %188 = arith.negf %187 : vector<2x32xf32>
    %189 = math.exp %188 : vector<2x32xf32>
    %cst_56 = arith.constant 1.000000e+00 : f32
    %190 = vector.broadcast %cst_56 : f32 to vector<2x32xf32>
    %191 = arith.addf %190, %189 : vector<2x32xf32>
    %192 = arith.divf %190, %191 : vector<2x32xf32>
    %193 = vector.extract_strided_slice %180 {offsets = [0, 64], sizes = [2, 32], strides = [1, 1]} : vector<2x128xf32> to vector<2x32xf32>
    %194 = math.tanh %193 : vector<2x32xf32>
    %195 = vector.extract_strided_slice %180 {offsets = [0, 96], sizes = [2, 32], strides = [1, 1]} : vector<2x128xf32> to vector<2x32xf32>
    %196 = arith.negf %195 : vector<2x32xf32>
    %197 = math.exp %196 : vector<2x32xf32>
    %cst_57 = arith.constant 1.000000e+00 : f32
    %198 = vector.broadcast %cst_57 : f32 to vector<2x32xf32>
    %199 = arith.addf %198, %197 : vector<2x32xf32>
    %200 = arith.divf %198, %199 : vector<2x32xf32>
    %201 = arith.mulf %192, %170 : vector<2x32xf32>
    %202 = arith.mulf %186, %194 : vector<2x32xf32>
    %203 = arith.addf %201, %202 : vector<2x32xf32>
    %204 = math.tanh %203 : vector<2x32xf32>
    %205 = arith.mulf %200, %204 : vector<2x32xf32>
    %206 = vector.shape_cast %205 : vector<2x32xf32> to vector<2x1x32xf32>
    %c0_58 = arith.constant 0 : index
    %207 = arith.index_cast %c5_i32 : i32 to index
    %c0_59 = arith.constant 0 : index
    %208 = vector.load %arg15[%c0_58, %207, %c0_59] : memref<2x8x32xf32, #tpu.memory_space<vmem>>, vector<2x1x32xf32>
    tpu.vector_store %arg15[%c0_58, %207, %c0_59], %206 {strides = array<i32>} : memref<2x8x32xf32, #tpu.memory_space<vmem>>, vector<2x1x32xf32>,
    %c6_i32 = arith.constant 6 : i32
    %c0_60 = arith.constant 0 : index
    %209 = arith.index_cast %c6_i32 : i32 to index
    %c0_61 = arith.constant 0 : index
    %210 = vector.load %arg14[%c0_60, %209, %c0_61] : memref<2x8x128xf32, #tpu.memory_space<vmem>>, vector<2x1x128xf32>
    %211 = vector.shape_cast %210 : vector<2x1x128xf32> to vector<2x128xf32>
    %cst_62 = arith.constant dense<0.000000e+00> : vector<2x128xf32>
    %212 = tpu.matmul %205, %9, %cst_62 {dimension_numbers = #tpu.dot_dimension_numbers<[1], [0], [0], [1], [0, 0, 1, 1], [], []>} : vector<2x32xf32>, vector<32x128xf32>, vector<2x128xf32> -> vector<2x128xf32>
    %213 = arith.addf %211, %212 : vector<2x128xf32>
    %214 = vector.extract_strided_slice %213 {offsets = [0, 0], sizes = [2, 32], strides = [1, 1]} : vector<2x128xf32> to vector<2x32xf32>
    %215 = arith.negf %214 : vector<2x32xf32>
    %216 = math.exp %215 : vector<2x32xf32>
    %cst_63 = arith.constant 1.000000e+00 : f32
    %217 = vector.broadcast %cst_63 : f32 to vector<2x32xf32>
    %218 = arith.addf %217, %216 : vector<2x32xf32>
    %219 = arith.divf %217, %218 : vector<2x32xf32>
    %220 = vector.extract_strided_slice %213 {offsets = [0, 32], sizes = [2, 32], strides = [1, 1]} : vector<2x128xf32> to vector<2x32xf32>
    %221 = arith.negf %220 : vector<2x32xf32>
    %222 = math.exp %221 : vector<2x32xf32>
    %cst_64 = arith.constant 1.000000e+00 : f32
    %223 = vector.broadcast %cst_64 : f32 to vector<2x32xf32>
    %224 = arith.addf %223, %222 : vector<2x32xf32>
    %225 = arith.divf %223, %224 : vector<2x32xf32>
    %226 = vector.extract_strided_slice %213 {offsets = [0, 64], sizes = [2, 32], strides = [1, 1]} : vector<2x128xf32> to vector<2x32xf32>
    %227 = math.tanh %226 : vector<2x32xf32>
    %228 = vector.extract_strided_slice %213 {offsets = [0, 96], sizes = [2, 32], strides = [1, 1]} : vector<2x128xf32> to vector<2x32xf32>
    %229 = arith.negf %228 : vector<2x32xf32>
    %230 = math.exp %229 : vector<2x32xf32>
    %cst_65 = arith.constant 1.000000e+00 : f32
    %231 = vector.broadcast %cst_65 : f32 to vector<2x32xf32>
    %232 = arith.addf %231, %230 : vector<2x32xf32>
    %233 = arith.divf %231, %232 : vector<2x32xf32>
    %234 = arith.mulf %225, %203 : vector<2x32xf32>
    %235 = arith.mulf %219, %227 : vector<2x32xf32>
    %236 = arith.addf %234, %235 : vector<2x32xf32>
    %237 = math.tanh %236 : vector<2x32xf32>
    %238 = arith.mulf %233, %237 : vector<2x32xf32>
    %239 = vector.shape_cast %238 : vector<2x32xf32> to vector<2x1x32xf32>
    %c0_66 = arith.constant 0 : index
    %240 = arith.index_cast %c6_i32 : i32 to index
    %c0_67 = arith.constant 0 : index
    %241 = vector.load %arg15[%c0_66, %240, %c0_67] : memref<2x8x32xf32, #tpu.memory_space<vmem>>, vector<2x1x32xf32>
    tpu.vector_store %arg15[%c0_66, %240, %c0_67], %239 {strides = array<i32>} : memref<2x8x32xf32, #tpu.memory_space<vmem>>, vector<2x1x32xf32>,
    %c7_i32 = arith.constant 7 : i32
    %c0_68 = arith.constant 0 : index
    %242 = arith.index_cast %c7_i32 : i32 to index
    %c0_69 = arith.constant 0 : index
    %243 = vector.load %arg14[%c0_68, %242, %c0_69] : memref<2x8x128xf32, #tpu.memory_space<vmem>>, vector<2x1x128xf32>
    %244 = vector.shape_cast %243 : vector<2x1x128xf32> to vector<2x128xf32>
    %cst_70 = arith.constant dense<0.000000e+00> : vector<2x128xf32>
    %245 = tpu.matmul %238, %9, %cst_70 {dimension_numbers = #tpu.dot_dimension_numbers<[1], [0], [0], [1], [0, 0, 1, 1], [], []>} : vector<2x32xf32>, vector<32x128xf32>, vector<2x128xf32> -> vector<2x128xf32>
    %246 = arith.addf %244, %245 : vector<2x128xf32>
    %247 = vector.extract_strided_slice %246 {offsets = [0, 0], sizes = [2, 32], strides = [1, 1]} : vector<2x128xf32> to vector<2x32xf32>
    %248 = arith.negf %247 : vector<2x32xf32>
    %249 = math.exp %248 : vector<2x32xf32>
    %cst_71 = arith.constant 1.000000e+00 : f32
    %250 = vector.broadcast %cst_71 : f32 to vector<2x32xf32>
    %251 = arith.addf %250, %249 : vector<2x32xf32>
    %252 = arith.divf %250, %251 : vector<2x32xf32>
    %253 = vector.extract_strided_slice %246 {offsets = [0, 32], sizes = [2, 32], strides = [1, 1]} : vector<2x128xf32> to vector<2x32xf32>
    %254 = arith.negf %253 : vector<2x32xf32>
    %255 = math.exp %254 : vector<2x32xf32>
    %cst_72 = arith.constant 1.000000e+00 : f32
    %256 = vector.broadcast %cst_72 : f32 to vector<2x32xf32>
    %257 = arith.addf %256, %255 : vector<2x32xf32>
    %258 = arith.divf %256, %257 : vector<2x32xf32>
    %259 = vector.extract_strided_slice %246 {offsets = [0, 64], sizes = [2, 32], strides = [1, 1]} : vector<2x128xf32> to vector<2x32xf32>
    %260 = math.tanh %259 : vector<2x32xf32>
    %261 = vector.extract_strided_slice %246 {offsets = [0, 96], sizes = [2, 32], strides = [1, 1]} : vector<2x128xf32> to vector<2x32xf32>
    %262 = arith.negf %261 : vector<2x32xf32>
    %263 = math.exp %262 : vector<2x32xf32>
    %cst_73 = arith.constant 1.000000e+00 : f32
    %264 = vector.broadcast %cst_73 : f32 to vector<2x32xf32>
    %265 = arith.addf %264, %263 : vector<2x32xf32>
    %266 = arith.divf %264, %265 : vector<2x32xf32>
    %267 = arith.mulf %258, %236 : vector<2x32xf32>
    %268 = arith.mulf %252, %260 : vector<2x32xf32>
    %269 = arith.addf %267, %268 : vector<2x32xf32>
    %270 = math.tanh %269 : vector<2x32xf32>
    %271 = arith.mulf %266, %270 : vector<2x32xf32>
    %272 = vector.shape_cast %271 : vector<2x32xf32> to vector<2x1x32xf32>
    %c0_74 = arith.constant 0 : index
    %273 = arith.index_cast %c7_i32 : i32 to index
    %c0_75 = arith.constant 0 : index
    %274 = vector.load %arg15[%c0_74, %273, %c0_75] : memref<2x8x32xf32, #tpu.memory_space<vmem>>, vector<2x1x32xf32>
    tpu.vector_store %arg15[%c0_74, %273, %c0_75], %272 {strides = array<i32>} : memref<2x8x32xf32, #tpu.memory_space<vmem>>, vector<2x1x32xf32>,
    %c8_i32 = arith.constant 8 : i32
    %c0_76 = arith.constant 0 : index
    %c0_77 = arith.constant 0 : index
    %c0_78 = arith.constant 0 : index
    %275 = vector.load %arg15[%c0_76, %c0_77, %c0_78] : memref<2x8x32xf32, #tpu.memory_space<vmem>>, vector<2x8x32xf32>
    %276 = vector.shape_cast %275 : vector<2x8x32xf32> to vector<16x32xf32>
    %c0_79 = arith.constant 0 : index
    %c0_80 = arith.constant 0 : index
    %277 = vector.load %arg4[%c0_79, %c0_80] : memref<32x128xf32, #tpu.memory_space<vmem>>, vector<32x128xf32>
    %cst_81 = arith.constant dense<0.000000e+00> : vector<16x128xf32>
    %278 = tpu.matmul %276, %277, %cst_81 {dimension_numbers = #tpu.dot_dimension_numbers<[1], [0], [0], [1], [0, 0, 1, 1], [], []>} : vector<16x32xf32>, vector<32x128xf32>, vector<16x128xf32> -> vector<16x128xf32>
    %c0_82 = arith.constant 0 : index
    %c0_83 = arith.constant 0 : index
    %279 = vector.load %arg6[%c0_82, %c0_83] : memref<1x128xf32, #tpu.memory_space<vmem>>, vector<1x128xf32>
    %280 = vector.broadcast %279 : vector<1x128xf32> to vector<16x128xf32>
    %281 = arith.addf %278, %280 : vector<16x128xf32>
    %282 = vector.shape_cast %281 : vector<16x128xf32> to vector<2x8x128xf32>
    %c0_84 = arith.constant 0 : index
    %c0_85 = arith.constant 0 : index
    %c0_86 = arith.constant 0 : index
    %283 = vector.load %arg14[%c0_84, %c0_85, %c0_86] : memref<2x8x128xf32, #tpu.memory_space<vmem>>, vector<2x8x128xf32>
    tpu.vector_store %arg14[%c0_84, %c0_85, %c0_86], %282 {strides = array<i32>} : memref<2x8x128xf32, #tpu.memory_space<vmem>>, vector<2x8x128xf32>,
    %c0_87 = arith.constant 0 : index
    %c0_88 = arith.constant 0 : index
    %284 = vector.load %arg5[%c0_87, %c0_88] : memref<32x128xf32, #tpu.memory_space<vmem>>, vector<32x128xf32>
    %cst_89 = arith.constant 0.000000e+00 : f32
    %285 = vector.broadcast %cst_89 : f32 to vector<2x32xf32>
    %c0_i32_90 = arith.constant 0 : i32
    %c0_91 = arith.constant 0 : index
    %286 = arith.index_cast %c0_i32_90 : i32 to index
    %c0_92 = arith.constant 0 : index
    %287 = vector.load %arg14[%c0_91, %286, %c0_92] : memref<2x8x128xf32, #tpu.memory_space<vmem>>, vector<2x1x128xf32>
    %288 = vector.shape_cast %287 : vector<2x1x128xf32> to vector<2x128xf32>
    %cst_93 = arith.constant dense<0.000000e+00> : vector<2x128xf32>
    %289 = tpu.matmul %285, %284, %cst_93 {dimension_numbers = #tpu.dot_dimension_numbers<[1], [0], [0], [1], [0, 0, 1, 1], [], []>} : vector<2x32xf32>, vector<32x128xf32>, vector<2x128xf32> -> vector<2x128xf32>
    %290 = arith.addf %288, %289 : vector<2x128xf32>
    %291 = vector.extract_strided_slice %290 {offsets = [0, 0], sizes = [2, 32], strides = [1, 1]} : vector<2x128xf32> to vector<2x32xf32>
    %292 = arith.negf %291 : vector<2x32xf32>
    %293 = math.exp %292 : vector<2x32xf32>
    %cst_94 = arith.constant 1.000000e+00 : f32
    %294 = vector.broadcast %cst_94 : f32 to vector<2x32xf32>
    %295 = arith.addf %294, %293 : vector<2x32xf32>
    %296 = arith.divf %294, %295 : vector<2x32xf32>
    %297 = vector.extract_strided_slice %290 {offsets = [0, 32], sizes = [2, 32], strides = [1, 1]} : vector<2x128xf32> to vector<2x32xf32>
    %298 = arith.negf %297 : vector<2x32xf32>
    %299 = math.exp %298 : vector<2x32xf32>
    %cst_95 = arith.constant 1.000000e+00 : f32
    %300 = vector.broadcast %cst_95 : f32 to vector<2x32xf32>
    %301 = arith.addf %300, %299 : vector<2x32xf32>
    %302 = arith.divf %300, %301 : vector<2x32xf32>
    %303 = vector.extract_strided_slice %290 {offsets = [0, 64], sizes = [2, 32], strides = [1, 1]} : vector<2x128xf32> to vector<2x32xf32>
    %304 = math.tanh %303 : vector<2x32xf32>
    %305 = vector.extract_strided_slice %290 {offsets = [0, 96], sizes = [2, 32], strides = [1, 1]} : vector<2x128xf32> to vector<2x32xf32>
    %306 = arith.negf %305 : vector<2x32xf32>
    %307 = math.exp %306 : vector<2x32xf32>
    %cst_96 = arith.constant 1.000000e+00 : f32
    %308 = vector.broadcast %cst_96 : f32 to vector<2x32xf32>
    %309 = arith.addf %308, %307 : vector<2x32xf32>
    %310 = arith.divf %308, %309 : vector<2x32xf32>
    %311 = arith.mulf %302, %285 : vector<2x32xf32>
    %312 = arith.mulf %296, %304 : vector<2x32xf32>
    %313 = arith.addf %311, %312 : vector<2x32xf32>
    %314 = math.tanh %313 : vector<2x32xf32>
    %315 = arith.mulf %310, %314 : vector<2x32xf32>
    %316 = vector.shape_cast %315 : vector<2x32xf32> to vector<2x1x32xf32>
    %c0_97 = arith.constant 0 : index
    %317 = arith.index_cast %c0_i32_90 : i32 to index
    %c0_98 = arith.constant 0 : index
    %318 = vector.load %arg15[%c0_97, %317, %c0_98] : memref<2x8x32xf32, #tpu.memory_space<vmem>>, vector<2x1x32xf32>
    tpu.vector_store %arg15[%c0_97, %317, %c0_98], %316 {strides = array<i32>} : memref<2x8x32xf32, #tpu.memory_space<vmem>>, vector<2x1x32xf32>,
    %c1_i32_99 = arith.constant 1 : i32
    %c0_100 = arith.constant 0 : index
    %319 = arith.index_cast %c1_i32_99 : i32 to index
    %c0_101 = arith.constant 0 : index
    %320 = vector.load %arg14[%c0_100, %319, %c0_101] : memref<2x8x128xf32, #tpu.memory_space<vmem>>, vector<2x1x128xf32>
    %321 = vector.shape_cast %320 : vector<2x1x128xf32> to vector<2x128xf32>
    %cst_102 = arith.constant dense<0.000000e+00> : vector<2x128xf32>
    %322 = tpu.matmul %315, %284, %cst_102 {dimension_numbers = #tpu.dot_dimension_numbers<[1], [0], [0], [1], [0, 0, 1, 1], [], []>} : vector<2x32xf32>, vector<32x128xf32>, vector<2x128xf32> -> vector<2x128xf32>
    %323 = arith.addf %321, %322 : vector<2x128xf32>
    %324 = vector.extract_strided_slice %323 {offsets = [0, 0], sizes = [2, 32], strides = [1, 1]} : vector<2x128xf32> to vector<2x32xf32>
    %325 = arith.negf %324 : vector<2x32xf32>
    %326 = math.exp %325 : vector<2x32xf32>
    %cst_103 = arith.constant 1.000000e+00 : f32
    %327 = vector.broadcast %cst_103 : f32 to vector<2x32xf32>
    %328 = arith.addf %327, %326 : vector<2x32xf32>
    %329 = arith.divf %327, %328 : vector<2x32xf32>
    %330 = vector.extract_strided_slice %323 {offsets = [0, 32], sizes = [2, 32], strides = [1, 1]} : vector<2x128xf32> to vector<2x32xf32>
    %331 = arith.negf %330 : vector<2x32xf32>
    %332 = math.exp %331 : vector<2x32xf32>
    %cst_104 = arith.constant 1.000000e+00 : f32
    %333 = vector.broadcast %cst_104 : f32 to vector<2x32xf32>
    %334 = arith.addf %333, %332 : vector<2x32xf32>
    %335 = arith.divf %333, %334 : vector<2x32xf32>
    %336 = vector.extract_strided_slice %323 {offsets = [0, 64], sizes = [2, 32], strides = [1, 1]} : vector<2x128xf32> to vector<2x32xf32>
    %337 = math.tanh %336 : vector<2x32xf32>
    %338 = vector.extract_strided_slice %323 {offsets = [0, 96], sizes = [2, 32], strides = [1, 1]} : vector<2x128xf32> to vector<2x32xf32>
    %339 = arith.negf %338 : vector<2x32xf32>
    %340 = math.exp %339 : vector<2x32xf32>
    %cst_105 = arith.constant 1.000000e+00 : f32
    %341 = vector.broadcast %cst_105 : f32 to vector<2x32xf32>
    %342 = arith.addf %341, %340 : vector<2x32xf32>
    %343 = arith.divf %341, %342 : vector<2x32xf32>
    %344 = arith.mulf %335, %313 : vector<2x32xf32>
    %345 = arith.mulf %329, %337 : vector<2x32xf32>
    %346 = arith.addf %344, %345 : vector<2x32xf32>
    %347 = math.tanh %346 : vector<2x32xf32>
    %348 = arith.mulf %343, %347 : vector<2x32xf32>
    %349 = vector.shape_cast %348 : vector<2x32xf32> to vector<2x1x32xf32>
    %c0_106 = arith.constant 0 : index
    %350 = arith.index_cast %c1_i32_99 : i32 to index
    %c0_107 = arith.constant 0 : index
    %351 = vector.load %arg15[%c0_106, %350, %c0_107] : memref<2x8x32xf32, #tpu.memory_space<vmem>>, vector<2x1x32xf32>
    tpu.vector_store %arg15[%c0_106, %350, %c0_107], %349 {strides = array<i32>} : memref<2x8x32xf32, #tpu.memory_space<vmem>>, vector<2x1x32xf32>,
    %c2_i32_108 = arith.constant 2 : i32
    %c0_109 = arith.constant 0 : index
    %352 = arith.index_cast %c2_i32_108 : i32 to index
    %c0_110 = arith.constant 0 : index
    %353 = vector.load %arg14[%c0_109, %352, %c0_110] : memref<2x8x128xf32, #tpu.memory_space<vmem>>, vector<2x1x128xf32>
    %354 = vector.shape_cast %353 : vector<2x1x128xf32> to vector<2x128xf32>
    %cst_111 = arith.constant dense<0.000000e+00> : vector<2x128xf32>
    %355 = tpu.matmul %348, %284, %cst_111 {dimension_numbers = #tpu.dot_dimension_numbers<[1], [0], [0], [1], [0, 0, 1, 1], [], []>} : vector<2x32xf32>, vector<32x128xf32>, vector<2x128xf32> -> vector<2x128xf32>
    %356 = arith.addf %354, %355 : vector<2x128xf32>
    %357 = vector.extract_strided_slice %356 {offsets = [0, 0], sizes = [2, 32], strides = [1, 1]} : vector<2x128xf32> to vector<2x32xf32>
    %358 = arith.negf %357 : vector<2x32xf32>
    %359 = math.exp %358 : vector<2x32xf32>
    %cst_112 = arith.constant 1.000000e+00 : f32
    %360 = vector.broadcast %cst_112 : f32 to vector<2x32xf32>
    %361 = arith.addf %360, %359 : vector<2x32xf32>
    %362 = arith.divf %360, %361 : vector<2x32xf32>
    %363 = vector.extract_strided_slice %356 {offsets = [0, 32], sizes = [2, 32], strides = [1, 1]} : vector<2x128xf32> to vector<2x32xf32>
    %364 = arith.negf %363 : vector<2x32xf32>
    %365 = math.exp %364 : vector<2x32xf32>
    %cst_113 = arith.constant 1.000000e+00 : f32
    %366 = vector.broadcast %cst_113 : f32 to vector<2x32xf32>
    %367 = arith.addf %366, %365 : vector<2x32xf32>
    %368 = arith.divf %366, %367 : vector<2x32xf32>
    %369 = vector.extract_strided_slice %356 {offsets = [0, 64], sizes = [2, 32], strides = [1, 1]} : vector<2x128xf32> to vector<2x32xf32>
    %370 = math.tanh %369 : vector<2x32xf32>
    %371 = vector.extract_strided_slice %356 {offsets = [0, 96], sizes = [2, 32], strides = [1, 1]} : vector<2x128xf32> to vector<2x32xf32>
    %372 = arith.negf %371 : vector<2x32xf32>
    %373 = math.exp %372 : vector<2x32xf32>
    %cst_114 = arith.constant 1.000000e+00 : f32
    %374 = vector.broadcast %cst_114 : f32 to vector<2x32xf32>
    %375 = arith.addf %374, %373 : vector<2x32xf32>
    %376 = arith.divf %374, %375 : vector<2x32xf32>
    %377 = arith.mulf %368, %346 : vector<2x32xf32>
    %378 = arith.mulf %362, %370 : vector<2x32xf32>
    %379 = arith.addf %377, %378 : vector<2x32xf32>
    %380 = math.tanh %379 : vector<2x32xf32>
    %381 = arith.mulf %376, %380 : vector<2x32xf32>
    %382 = vector.shape_cast %381 : vector<2x32xf32> to vector<2x1x32xf32>
    %c0_115 = arith.constant 0 : index
    %383 = arith.index_cast %c2_i32_108 : i32 to index
    %c0_116 = arith.constant 0 : index
    %384 = vector.load %arg15[%c0_115, %383, %c0_116] : memref<2x8x32xf32, #tpu.memory_space<vmem>>, vector<2x1x32xf32>
    tpu.vector_store %arg15[%c0_115, %383, %c0_116], %382 {strides = array<i32>} : memref<2x8x32xf32, #tpu.memory_space<vmem>>, vector<2x1x32xf32>,
    %c3_i32_117 = arith.constant 3 : i32
    %c0_118 = arith.constant 0 : index
    %385 = arith.index_cast %c3_i32_117 : i32 to index
    %c0_119 = arith.constant 0 : index
    %386 = vector.load %arg14[%c0_118, %385, %c0_119] : memref<2x8x128xf32, #tpu.memory_space<vmem>>, vector<2x1x128xf32>
    %387 = vector.shape_cast %386 : vector<2x1x128xf32> to vector<2x128xf32>
    %cst_120 = arith.constant dense<0.000000e+00> : vector<2x128xf32>
    %388 = tpu.matmul %381, %284, %cst_120 {dimension_numbers = #tpu.dot_dimension_numbers<[1], [0], [0], [1], [0, 0, 1, 1], [], []>} : vector<2x32xf32>, vector<32x128xf32>, vector<2x128xf32> -> vector<2x128xf32>
    %389 = arith.addf %387, %388 : vector<2x128xf32>
    %390 = vector.extract_strided_slice %389 {offsets = [0, 0], sizes = [2, 32], strides = [1, 1]} : vector<2x128xf32> to vector<2x32xf32>
    %391 = arith.negf %390 : vector<2x32xf32>
    %392 = math.exp %391 : vector<2x32xf32>
    %cst_121 = arith.constant 1.000000e+00 : f32
    %393 = vector.broadcast %cst_121 : f32 to vector<2x32xf32>
    %394 = arith.addf %393, %392 : vector<2x32xf32>
    %395 = arith.divf %393, %394 : vector<2x32xf32>
    %396 = vector.extract_strided_slice %389 {offsets = [0, 32], sizes = [2, 32], strides = [1, 1]} : vector<2x128xf32> to vector<2x32xf32>
    %397 = arith.negf %396 : vector<2x32xf32>
    %398 = math.exp %397 : vector<2x32xf32>
    %cst_122 = arith.constant 1.000000e+00 : f32
    %399 = vector.broadcast %cst_122 : f32 to vector<2x32xf32>
    %400 = arith.addf %399, %398 : vector<2x32xf32>
    %401 = arith.divf %399, %400 : vector<2x32xf32>
    %402 = vector.extract_strided_slice %389 {offsets = [0, 64], sizes = [2, 32], strides = [1, 1]} : vector<2x128xf32> to vector<2x32xf32>
    %403 = math.tanh %402 : vector<2x32xf32>
    %404 = vector.extract_strided_slice %389 {offsets = [0, 96], sizes = [2, 32], strides = [1, 1]} : vector<2x128xf32> to vector<2x32xf32>
    %405 = arith.negf %404 : vector<2x32xf32>
    %406 = math.exp %405 : vector<2x32xf32>
    %cst_123 = arith.constant 1.000000e+00 : f32
    %407 = vector.broadcast %cst_123 : f32 to vector<2x32xf32>
    %408 = arith.addf %407, %406 : vector<2x32xf32>
    %409 = arith.divf %407, %408 : vector<2x32xf32>
    %410 = arith.mulf %401, %379 : vector<2x32xf32>
    %411 = arith.mulf %395, %403 : vector<2x32xf32>
    %412 = arith.addf %410, %411 : vector<2x32xf32>
    %413 = math.tanh %412 : vector<2x32xf32>
    %414 = arith.mulf %409, %413 : vector<2x32xf32>
    %415 = vector.shape_cast %414 : vector<2x32xf32> to vector<2x1x32xf32>
    %c0_124 = arith.constant 0 : index
    %416 = arith.index_cast %c3_i32_117 : i32 to index
    %c0_125 = arith.constant 0 : index
    %417 = vector.load %arg15[%c0_124, %416, %c0_125] : memref<2x8x32xf32, #tpu.memory_space<vmem>>, vector<2x1x32xf32>
    tpu.vector_store %arg15[%c0_124, %416, %c0_125], %415 {strides = array<i32>} : memref<2x8x32xf32, #tpu.memory_space<vmem>>, vector<2x1x32xf32>,
    %c4_i32_126 = arith.constant 4 : i32
    %c0_127 = arith.constant 0 : index
    %418 = arith.index_cast %c4_i32_126 : i32 to index
    %c0_128 = arith.constant 0 : index
    %419 = vector.load %arg14[%c0_127, %418, %c0_128] : memref<2x8x128xf32, #tpu.memory_space<vmem>>, vector<2x1x128xf32>
    %420 = vector.shape_cast %419 : vector<2x1x128xf32> to vector<2x128xf32>
    %cst_129 = arith.constant dense<0.000000e+00> : vector<2x128xf32>
    %421 = tpu.matmul %414, %284, %cst_129 {dimension_numbers = #tpu.dot_dimension_numbers<[1], [0], [0], [1], [0, 0, 1, 1], [], []>} : vector<2x32xf32>, vector<32x128xf32>, vector<2x128xf32> -> vector<2x128xf32>
    %422 = arith.addf %420, %421 : vector<2x128xf32>
    %423 = vector.extract_strided_slice %422 {offsets = [0, 0], sizes = [2, 32], strides = [1, 1]} : vector<2x128xf32> to vector<2x32xf32>
    %424 = arith.negf %423 : vector<2x32xf32>
    %425 = math.exp %424 : vector<2x32xf32>
    %cst_130 = arith.constant 1.000000e+00 : f32
    %426 = vector.broadcast %cst_130 : f32 to vector<2x32xf32>
    %427 = arith.addf %426, %425 : vector<2x32xf32>
    %428 = arith.divf %426, %427 : vector<2x32xf32>
    %429 = vector.extract_strided_slice %422 {offsets = [0, 32], sizes = [2, 32], strides = [1, 1]} : vector<2x128xf32> to vector<2x32xf32>
    %430 = arith.negf %429 : vector<2x32xf32>
    %431 = math.exp %430 : vector<2x32xf32>
    %cst_131 = arith.constant 1.000000e+00 : f32
    %432 = vector.broadcast %cst_131 : f32 to vector<2x32xf32>
    %433 = arith.addf %432, %431 : vector<2x32xf32>
    %434 = arith.divf %432, %433 : vector<2x32xf32>
    %435 = vector.extract_strided_slice %422 {offsets = [0, 64], sizes = [2, 32], strides = [1, 1]} : vector<2x128xf32> to vector<2x32xf32>
    %436 = math.tanh %435 : vector<2x32xf32>
    %437 = vector.extract_strided_slice %422 {offsets = [0, 96], sizes = [2, 32], strides = [1, 1]} : vector<2x128xf32> to vector<2x32xf32>
    %438 = arith.negf %437 : vector<2x32xf32>
    %439 = math.exp %438 : vector<2x32xf32>
    %cst_132 = arith.constant 1.000000e+00 : f32
    %440 = vector.broadcast %cst_132 : f32 to vector<2x32xf32>
    %441 = arith.addf %440, %439 : vector<2x32xf32>
    %442 = arith.divf %440, %441 : vector<2x32xf32>
    %443 = arith.mulf %434, %412 : vector<2x32xf32>
    %444 = arith.mulf %428, %436 : vector<2x32xf32>
    %445 = arith.addf %443, %444 : vector<2x32xf32>
    %446 = math.tanh %445 : vector<2x32xf32>
    %447 = arith.mulf %442, %446 : vector<2x32xf32>
    %448 = vector.shape_cast %447 : vector<2x32xf32> to vector<2x1x32xf32>
    %c0_133 = arith.constant 0 : index
    %449 = arith.index_cast %c4_i32_126 : i32 to index
    %c0_134 = arith.constant 0 : index
    %450 = vector.load %arg15[%c0_133, %449, %c0_134] : memref<2x8x32xf32, #tpu.memory_space<vmem>>, vector<2x1x32xf32>
    tpu.vector_store %arg15[%c0_133, %449, %c0_134], %448 {strides = array<i32>} : memref<2x8x32xf32, #tpu.memory_space<vmem>>, vector<2x1x32xf32>,
    %c5_i32_135 = arith.constant 5 : i32
    %c0_136 = arith.constant 0 : index
    %451 = arith.index_cast %c5_i32_135 : i32 to index
    %c0_137 = arith.constant 0 : index
    %452 = vector.load %arg14[%c0_136, %451, %c0_137] : memref<2x8x128xf32, #tpu.memory_space<vmem>>, vector<2x1x128xf32>
    %453 = vector.shape_cast %452 : vector<2x1x128xf32> to vector<2x128xf32>
    %cst_138 = arith.constant dense<0.000000e+00> : vector<2x128xf32>
    %454 = tpu.matmul %447, %284, %cst_138 {dimension_numbers = #tpu.dot_dimension_numbers<[1], [0], [0], [1], [0, 0, 1, 1], [], []>} : vector<2x32xf32>, vector<32x128xf32>, vector<2x128xf32> -> vector<2x128xf32>
    %455 = arith.addf %453, %454 : vector<2x128xf32>
    %456 = vector.extract_strided_slice %455 {offsets = [0, 0], sizes = [2, 32], strides = [1, 1]} : vector<2x128xf32> to vector<2x32xf32>
    %457 = arith.negf %456 : vector<2x32xf32>
    %458 = math.exp %457 : vector<2x32xf32>
    %cst_139 = arith.constant 1.000000e+00 : f32
    %459 = vector.broadcast %cst_139 : f32 to vector<2x32xf32>
    %460 = arith.addf %459, %458 : vector<2x32xf32>
    %461 = arith.divf %459, %460 : vector<2x32xf32>
    %462 = vector.extract_strided_slice %455 {offsets = [0, 32], sizes = [2, 32], strides = [1, 1]} : vector<2x128xf32> to vector<2x32xf32>
    %463 = arith.negf %462 : vector<2x32xf32>
    %464 = math.exp %463 : vector<2x32xf32>
    %cst_140 = arith.constant 1.000000e+00 : f32
    %465 = vector.broadcast %cst_140 : f32 to vector<2x32xf32>
    %466 = arith.addf %465, %464 : vector<2x32xf32>
    %467 = arith.divf %465, %466 : vector<2x32xf32>
    %468 = vector.extract_strided_slice %455 {offsets = [0, 64], sizes = [2, 32], strides = [1, 1]} : vector<2x128xf32> to vector<2x32xf32>
    %469 = math.tanh %468 : vector<2x32xf32>
    %470 = vector.extract_strided_slice %455 {offsets = [0, 96], sizes = [2, 32], strides = [1, 1]} : vector<2x128xf32> to vector<2x32xf32>
    %471 = arith.negf %470 : vector<2x32xf32>
    %472 = math.exp %471 : vector<2x32xf32>
    %cst_141 = arith.constant 1.000000e+00 : f32
    %473 = vector.broadcast %cst_141 : f32 to vector<2x32xf32>
    %474 = arith.addf %473, %472 : vector<2x32xf32>
    %475 = arith.divf %473, %474 : vector<2x32xf32>
    %476 = arith.mulf %467, %445 : vector<2x32xf32>
    %477 = arith.mulf %461, %469 : vector<2x32xf32>
    %478 = arith.addf %476, %477 : vector<2x32xf32>
    %479 = math.tanh %478 : vector<2x32xf32>
    %480 = arith.mulf %475, %479 : vector<2x32xf32>
    %481 = vector.shape_cast %480 : vector<2x32xf32> to vector<2x1x32xf32>
    %c0_142 = arith.constant 0 : index
    %482 = arith.index_cast %c5_i32_135 : i32 to index
    %c0_143 = arith.constant 0 : index
    %483 = vector.load %arg15[%c0_142, %482, %c0_143] : memref<2x8x32xf32, #tpu.memory_space<vmem>>, vector<2x1x32xf32>
    tpu.vector_store %arg15[%c0_142, %482, %c0_143], %481 {strides = array<i32>} : memref<2x8x32xf32, #tpu.memory_space<vmem>>, vector<2x1x32xf32>,
    %c6_i32_144 = arith.constant 6 : i32
    %c0_145 = arith.constant 0 : index
    %484 = arith.index_cast %c6_i32_144 : i32 to index
    %c0_146 = arith.constant 0 : index
    %485 = vector.load %arg14[%c0_145, %484, %c0_146] : memref<2x8x128xf32, #tpu.memory_space<vmem>>, vector<2x1x128xf32>
    %486 = vector.shape_cast %485 : vector<2x1x128xf32> to vector<2x128xf32>
    %cst_147 = arith.constant dense<0.000000e+00> : vector<2x128xf32>
    %487 = tpu.matmul %480, %284, %cst_147 {dimension_numbers = #tpu.dot_dimension_numbers<[1], [0], [0], [1], [0, 0, 1, 1], [], []>} : vector<2x32xf32>, vector<32x128xf32>, vector<2x128xf32> -> vector<2x128xf32>
    %488 = arith.addf %486, %487 : vector<2x128xf32>
    %489 = vector.extract_strided_slice %488 {offsets = [0, 0], sizes = [2, 32], strides = [1, 1]} : vector<2x128xf32> to vector<2x32xf32>
    %490 = arith.negf %489 : vector<2x32xf32>
    %491 = math.exp %490 : vector<2x32xf32>
    %cst_148 = arith.constant 1.000000e+00 : f32
    %492 = vector.broadcast %cst_148 : f32 to vector<2x32xf32>
    %493 = arith.addf %492, %491 : vector<2x32xf32>
    %494 = arith.divf %492, %493 : vector<2x32xf32>
    %495 = vector.extract_strided_slice %488 {offsets = [0, 32], sizes = [2, 32], strides = [1, 1]} : vector<2x128xf32> to vector<2x32xf32>
    %496 = arith.negf %495 : vector<2x32xf32>
    %497 = math.exp %496 : vector<2x32xf32>
    %cst_149 = arith.constant 1.000000e+00 : f32
    %498 = vector.broadcast %cst_149 : f32 to vector<2x32xf32>
    %499 = arith.addf %498, %497 : vector<2x32xf32>
    %500 = arith.divf %498, %499 : vector<2x32xf32>
    %501 = vector.extract_strided_slice %488 {offsets = [0, 64], sizes = [2, 32], strides = [1, 1]} : vector<2x128xf32> to vector<2x32xf32>
    %502 = math.tanh %501 : vector<2x32xf32>
    %503 = vector.extract_strided_slice %488 {offsets = [0, 96], sizes = [2, 32], strides = [1, 1]} : vector<2x128xf32> to vector<2x32xf32>
    %504 = arith.negf %503 : vector<2x32xf32>
    %505 = math.exp %504 : vector<2x32xf32>
    %cst_150 = arith.constant 1.000000e+00 : f32
    %506 = vector.broadcast %cst_150 : f32 to vector<2x32xf32>
    %507 = arith.addf %506, %505 : vector<2x32xf32>
    %508 = arith.divf %506, %507 : vector<2x32xf32>
    %509 = arith.mulf %500, %478 : vector<2x32xf32>
    %510 = arith.mulf %494, %502 : vector<2x32xf32>
    %511 = arith.addf %509, %510 : vector<2x32xf32>
    %512 = math.tanh %511 : vector<2x32xf32>
    %513 = arith.mulf %508, %512 : vector<2x32xf32>
    %514 = vector.shape_cast %513 : vector<2x32xf32> to vector<2x1x32xf32>
    %c0_151 = arith.constant 0 : index
    %515 = arith.index_cast %c6_i32_144 : i32 to index
    %c0_152 = arith.constant 0 : index
    %516 = vector.load %arg15[%c0_151, %515, %c0_152] : memref<2x8x32xf32, #tpu.memory_space<vmem>>, vector<2x1x32xf32>
    tpu.vector_store %arg15[%c0_151, %515, %c0_152], %514 {strides = array<i32>} : memref<2x8x32xf32, #tpu.memory_space<vmem>>, vector<2x1x32xf32>,
    %c7_i32_153 = arith.constant 7 : i32
    %c0_154 = arith.constant 0 : index
    %517 = arith.index_cast %c7_i32_153 : i32 to index
    %c0_155 = arith.constant 0 : index
    %518 = vector.load %arg14[%c0_154, %517, %c0_155] : memref<2x8x128xf32, #tpu.memory_space<vmem>>, vector<2x1x128xf32>
    %519 = vector.shape_cast %518 : vector<2x1x128xf32> to vector<2x128xf32>
    %cst_156 = arith.constant dense<0.000000e+00> : vector<2x128xf32>
    %520 = tpu.matmul %513, %284, %cst_156 {dimension_numbers = #tpu.dot_dimension_numbers<[1], [0], [0], [1], [0, 0, 1, 1], [], []>} : vector<2x32xf32>, vector<32x128xf32>, vector<2x128xf32> -> vector<2x128xf32>
    %521 = arith.addf %519, %520 : vector<2x128xf32>
    %522 = vector.extract_strided_slice %521 {offsets = [0, 0], sizes = [2, 32], strides = [1, 1]} : vector<2x128xf32> to vector<2x32xf32>
    %523 = arith.negf %522 : vector<2x32xf32>
    %524 = math.exp %523 : vector<2x32xf32>
    %cst_157 = arith.constant 1.000000e+00 : f32
    %525 = vector.broadcast %cst_157 : f32 to vector<2x32xf32>
    %526 = arith.addf %525, %524 : vector<2x32xf32>
    %527 = arith.divf %525, %526 : vector<2x32xf32>
    %528 = vector.extract_strided_slice %521 {offsets = [0, 32], sizes = [2, 32], strides = [1, 1]} : vector<2x128xf32> to vector<2x32xf32>
    %529 = arith.negf %528 : vector<2x32xf32>
    %530 = math.exp %529 : vector<2x32xf32>
    %cst_158 = arith.constant 1.000000e+00 : f32
    %531 = vector.broadcast %cst_158 : f32 to vector<2x32xf32>
    %532 = arith.addf %531, %530 : vector<2x32xf32>
    %533 = arith.divf %531, %532 : vector<2x32xf32>
    %534 = vector.extract_strided_slice %521 {offsets = [0, 64], sizes = [2, 32], strides = [1, 1]} : vector<2x128xf32> to vector<2x32xf32>
    %535 = math.tanh %534 : vector<2x32xf32>
    %536 = vector.extract_strided_slice %521 {offsets = [0, 96], sizes = [2, 32], strides = [1, 1]} : vector<2x128xf32> to vector<2x32xf32>
    %537 = arith.negf %536 : vector<2x32xf32>
    %538 = math.exp %537 : vector<2x32xf32>
    %cst_159 = arith.constant 1.000000e+00 : f32
    %539 = vector.broadcast %cst_159 : f32 to vector<2x32xf32>
    %540 = arith.addf %539, %538 : vector<2x32xf32>
    %541 = arith.divf %539, %540 : vector<2x32xf32>
    %542 = arith.mulf %533, %511 : vector<2x32xf32>
    %543 = arith.mulf %527, %535 : vector<2x32xf32>
    %544 = arith.addf %542, %543 : vector<2x32xf32>
    %545 = math.tanh %544 : vector<2x32xf32>
    %546 = arith.mulf %541, %545 : vector<2x32xf32>
    %547 = vector.shape_cast %546 : vector<2x32xf32> to vector<2x1x32xf32>
    %c0_160 = arith.constant 0 : index
    %548 = arith.index_cast %c7_i32_153 : i32 to index
    %c0_161 = arith.constant 0 : index
    %549 = vector.load %arg15[%c0_160, %548, %c0_161] : memref<2x8x32xf32, #tpu.memory_space<vmem>>, vector<2x1x32xf32>
    tpu.vector_store %arg15[%c0_160, %548, %c0_161], %547 {strides = array<i32>} : memref<2x8x32xf32, #tpu.memory_space<vmem>>, vector<2x1x32xf32>,
    %c8_i32_162 = arith.constant 8 : i32
    %c0_163 = arith.constant 0 : index
    %c0_164 = arith.constant 0 : index
    %c0_165 = arith.constant 0 : index
    %550 = vector.load %arg15[%c0_163, %c0_164, %c0_165] : memref<2x8x32xf32, #tpu.memory_space<vmem>>, vector<2x8x32xf32>
    %551 = vector.shape_cast %550 : vector<2x8x32xf32> to vector<16x32xf32>
    %c0_166 = arith.constant 0 : index
    %c0_167 = arith.constant 0 : index
    %552 = vector.load %arg7[%c0_166, %c0_167] : memref<32x64xf32, #tpu.memory_space<vmem>>, vector<32x64xf32>
    %cst_168 = arith.constant dense<0.000000e+00> : vector<16x64xf32>
    %553 = tpu.matmul %551, %552, %cst_168 {dimension_numbers = #tpu.dot_dimension_numbers<[1], [0], [0], [1], [0, 0, 1, 1], [], []>} : vector<16x32xf32>, vector<32x64xf32>, vector<16x64xf32> -> vector<16x64xf32>
    %c0_169 = arith.constant 0 : index
    %c0_170 = arith.constant 0 : index
    %554 = vector.load %arg8[%c0_169, %c0_170] : memref<1x64xf32, #tpu.memory_space<vmem>>, vector<1x64xf32>
    %555 = vector.broadcast %554 : vector<1x64xf32> to vector<16x64xf32>
    %556 = arith.addf %553, %555 : vector<16x64xf32>
    %cst_171 = arith.constant 0.000000e+00 : f32
    %557 = vector.broadcast %cst_171 : f32 to vector<16x64xf32>
    %558 = arith.maximumf %556, %557 : vector<16x64xf32>
    %c0_172 = arith.constant 0 : index
    %c0_173 = arith.constant 0 : index
    %559 = vector.load %arg9[%c0_172, %c0_173] : memref<64x32xf32, #tpu.memory_space<vmem>>, vector<64x32xf32>
    %cst_174 = arith.constant dense<0.000000e+00> : vector<16x32xf32>
    %560 = tpu.matmul %558, %559, %cst_174 {dimension_numbers = #tpu.dot_dimension_numbers<[1], [0], [0], [1], [0, 0, 1, 1], [], []>} : vector<16x64xf32>, vector<64x32xf32>, vector<16x32xf32> -> vector<16x32xf32>
    %c0_175 = arith.constant 0 : index
    %c0_176 = arith.constant 0 : index
    %561 = vector.load %arg10[%c0_175, %c0_176] : memref<1x32xf32, #tpu.memory_space<vmem>>, vector<1x32xf32>
    %562 = vector.broadcast %561 : vector<1x32xf32> to vector<16x32xf32>
    %563 = arith.addf %560, %562 : vector<16x32xf32>
    %c0_177 = arith.constant 0 : index
    %c0_178 = arith.constant 0 : index
    %564 = vector.load %arg11[%c0_177, %c0_178] : memref<32x1xf32, #tpu.memory_space<vmem>>, vector<32x1xf32>
    %cst_179 = arith.constant dense<0.000000e+00> : vector<16x1xf32>
    %565 = tpu.matmul %563, %564, %cst_179 {dimension_numbers = #tpu.dot_dimension_numbers<[1], [0], [0], [1], [0, 0, 1, 1], [], []>} : vector<16x32xf32>, vector<32x1xf32>, vector<16x1xf32> -> vector<16x1xf32>
    %c0_180 = arith.constant 0 : index
    %c0_181 = arith.constant 0 : index
    %566 = vector.load %arg12[%c0_180, %c0_181] : memref<1x1xf32, #tpu.memory_space<vmem>>, vector<1x1xf32>
    %567 = vector.broadcast %566 : vector<1x1xf32> to vector<16x1xf32>
    %568 = arith.addf %565, %567 : vector<16x1xf32>
    %569 = vector.shape_cast %568 : vector<16x1xf32> to vector<2x8x1xf32>
    %c0_182 = arith.constant 0 : index
    %c0_183 = arith.constant 0 : index
    %c0_184 = arith.constant 0 : index
    %570 = vector.load %arg13[%c0_182, %c0_183, %c0_184] : memref<2x8x1xf32, #tpu.memory_space<vmem>>, vector<2x8x1xf32>
    tpu.vector_store %arg13[%c0_182, %c0_183, %c0_184], %569 {strides = array<i32>} : memref<2x8x1xf32, #tpu.memory_space<vmem>>, vector<2x8x1xf32>,
    return
  }
}

</mosaic_0001>

<llo_original>
// kernel: tpu_custom_call.1
$region0: #{tpu_custom_call.1}
  #allocation0 [shape = 'u32[]', space=smem, size = 0x4, offset = 0x4, fixed_abs, tag = 'smem constant byte address 0x4 - core index']
  #allocation1 [shape = 'u32[72,128]{1,0:T(1,128)}', space=vmem, size = 0x9000, scoped, tag = 'internal scratch']
  #allocation2 [shape = 'f32[2,8,128]{2,1,0:T(8,128)}', space=vmem, size = 0x2000, scoped, tag = 'scratch operand']
  #allocation3 [shape = 'f32[2,8,32]{2,1,0:T(8,128)}', space=vmem, size = 0x2000, scoped, tag = 'scratch operand']
  #allocation4 [shape = 'f32[1,1]{1,0:T(1,128)S(1)}', space=vmem, size = 0x200, scoped, tag = 'scoped memory for tpu_custom_call.1']
  %s0 = inlined_call_operand.vmem [shape: f32[2,8,4], index: 0, kind: input, shape index: {}]
  %s1 = inlined_call_operand.vmem [shape: f32[4,128], index: 1, kind: input, shape index: {}]
  %s2 = inlined_call_operand.vmem [shape: f32[32,128], index: 2, kind: input, shape index: {}]
  %s3 = inlined_call_operand.vmem [shape: f32[1,128], index: 3, kind: input, shape index: {}]
  %s4 = inlined_call_operand.vmem [shape: f32[32,128], index: 4, kind: input, shape index: {}]
  %s5 = inlined_call_operand.vmem [shape: f32[32,128], index: 5, kind: input, shape index: {}]
  %s6 = inlined_call_operand.vmem [shape: f32[1,128], index: 6, kind: input, shape index: {}]
  %s7 = inlined_call_operand.hbm [shape: f32[32,64], index: 7, kind: input, shape index: {}]
  %s8 = inlined_call_operand.vmem [shape: f32[1,64], index: 8, kind: input, shape index: {}]
  %s9 = inlined_call_operand.vmem [shape: f32[64,32], index: 9, kind: input, shape index: {}]
  %s10 = inlined_call_operand.vmem [shape: f32[1,32], index: 10, kind: input, shape index: {}]
  %s11 = inlined_call_operand.vmem [shape: f32[32,1], index: 11, kind: input, shape index: {}]
  %s12 = inlined_call_operand.<no memory space> [shape: f32[1,1], index: 12, kind: input, shape index: {}]
  %s13 = inlined_call_operand.vmem [shape: f32[2,8,1], index: 13, kind: output, shape index: {}]
  %s14 = sld [smem:[#allocation0]]
  $region66: #{tpu_custom_call.1} parent=0
    _
  %s16 = ssub.s32 1, %s14
  %s17 = scalar_select 0, %s16, %s14
  %v18 = vstv %s12
  %19 = vst [vmem:[#allocation4] sm:$0x1] %v18
  $region1: #{tpu_custom_call.1} parent=0
    #allocation5 [shape = 'u8[16384]{0}', space=vmem, size = 0x4000, scoped, tag = 'input window, operand 7, single buffered']
    #allocation6 [shape = 's32[1]{0}', space=sflag, size = 0x4, scoped, tag = 'scoped memory for tpu_custom_call.1']
    %20 = vsyncpa [#allocation6], 0
    // Predicated region
    $region2: #{tpu_custom_call.1} parent=1 // pred_check
      _
    $region3: #{tpu_custom_call.1} parent=1 // pred_check_branch
      %22 = sbr.rel (0) target = $region5
    $region4: #{tpu_custom_call.1} parent=1 // pred_region
      _
    $region5: #{tpu_custom_call.1} parent=1 // pred_fallthru
      _
    // Predicated region
    $region6: #{tpu_custom_call.1} parent=1 // pred_check
      _
    $region7: #{tpu_custom_call.1} parent=1 // pred_check_branch
      %24 = sbr.rel (0) target = $region9
    $region8: #{tpu_custom_call.1} parent=1 // pred_region
      _
    $region9: #{tpu_custom_call.1} parent=1 // pred_fallthru
      _
    // Predicated region
    $region10: #{tpu_custom_call.1} parent=1 // pred_check
      _
    $region11: #{tpu_custom_call.1} parent=1 // pred_check_branch
      %26 = sbr.rel (0) target = $region13
    $region12: #{tpu_custom_call.1} parent=1 // pred_region
      _
    $region13: #{tpu_custom_call.1} parent=1 // pred_fallthru
      _
    // Predicated region
    $region14: #{tpu_custom_call.1} parent=1 // pred_check
      _
    $region15: #{tpu_custom_call.1} parent=1 // pred_check_branch
      %28 = sbr.rel (0) target = $region17
    $region16: #{tpu_custom_call.1} parent=1 // pred_region
      _
    $region17: #{tpu_custom_call.1} parent=1 // pred_fallthru
      _
    // Predicated region
    $region18: #{tpu_custom_call.1} parent=1 // pred_check
      _
    $region19: #{tpu_custom_call.1} parent=1 // pred_check_branch
      %30 = sbr.rel (0) target = $region21
    $region20: #{tpu_custom_call.1} parent=1 // pred_region
      _
    $region21: #{tpu_custom_call.1} parent=1 // pred_fallthru
      _
    // Predicated region
    $region22: #{tpu_custom_call.1} parent=1 // pred_check
      _
    $region23: #{tpu_custom_call.1} parent=1 // pred_check_branch
      %32 = sbr.rel (0) target = $region25
    $region24: #{tpu_custom_call.1} parent=1 // pred_region
      _
    $region25: #{tpu_custom_call.1} parent=1 // pred_fallthru
      _
    // Predicated region
    $region26: #{tpu_custom_call.1} parent=1 // pred_check
      _
    $region27: #{tpu_custom_call.1} parent=1 // pred_check_branch
      %34 = sbr.rel (0) target = $region29
    $region28: #{tpu_custom_call.1} parent=1 // pred_region
      _
    $region29: #{tpu_custom_call.1} parent=1 // pred_fallthru
      _
    // Predicated region
    $region30: #{tpu_custom_call.1} parent=1 // pred_check
      _
    $region31: #{tpu_custom_call.1} parent=1 // pred_check_branch
      %36 = sbr.rel (0) target = $region33
    $region32: #{tpu_custom_call.1} parent=1 // pred_region
      %38 = vsyncadd [#allocation6], 0
      %s39 = sshll.u32 %s7, 4
      %s40 = int_to_ptr.hbm [resolvable:$true] %s39
      %s41 = sshll.u32 [#allocation5], 4
      %s42 = int_to_ptr.vmem [resolvable:$true] %s41
      %47 = dma.hbm_to_vmem [thread:$0]  %s40, 512, %s42, [#allocation6], 128, 128, 8
    $region33: #{tpu_custom_call.1} parent=1 // pred_fallthru
      _
    // Predicated region
    $region34: #{tpu_custom_call.1} parent=1 // pred_check
      _
    $region35: #{tpu_custom_call.1} parent=1 // pred_check_branch
      %49 = sbr.rel (0) target = $region37
    $region36: #{tpu_custom_call.1} parent=1 // pred_region
      _
    $region37: #{tpu_custom_call.1} parent=1 // pred_fallthru
      _
    // Predicated region
    $region38: #{tpu_custom_call.1} parent=1 // pred_check
      _
    $region39: #{tpu_custom_call.1} parent=1 // pred_check_branch
      %51 = sbr.rel (0) target = $region41
    $region40: #{tpu_custom_call.1} parent=1 // pred_region
      _
    $region41: #{tpu_custom_call.1} parent=1 // pred_fallthru
      _
    // Predicated region
    $region42: #{tpu_custom_call.1} parent=1 // pred_check
      _
    $region43: #{tpu_custom_call.1} parent=1 // pred_check_branch
      %53 = sbr.rel (0) target = $region45
    $region44: #{tpu_custom_call.1} parent=1 // pred_region
      _
    $region45: #{tpu_custom_call.1} parent=1 // pred_fallthru
      _
    // Predicated region
    $region46: #{tpu_custom_call.1} parent=1 // pred_check
      _
    $region47: #{tpu_custom_call.1} parent=1 // pred_check_branch
      %55 = sbr.rel (0) target = $region49
    $region48: #{tpu_custom_call.1} parent=1 // pred_region
      _
    $region49: #{tpu_custom_call.1} parent=1 // pred_fallthru
      _
    // Predicated region
    $region50: #{tpu_custom_call.1} parent=1 // pred_check
      _
    $region51: #{tpu_custom_call.1} parent=1 // pred_check_branch
      %57 = sbr.rel (0) target = $region53
    $region52: #{tpu_custom_call.1} parent=1 // pred_region
      _
    $region53: #{tpu_custom_call.1} parent=1 // pred_fallthru
      _
    // Predicated region
    $region54: #{tpu_custom_call.1} parent=1 // pred_check
      _
    $region55: #{tpu_custom_call.1} parent=1 // pred_check_branch
      %59 = sbr.rel (0) target = $region57
    $region56: #{tpu_custom_call.1} parent=1 // pred_region
      %61 = dma.done [#allocation6], 512
    $region57: #{tpu_custom_call.1} parent=1 // pred_fallthru
      _
    %v62 = vld [vmem:[%s0] sm:$0xff]
    %v63 = vld [vmem:[%s0 + $0x8] sm:$0xff]
    %v64 = vld [vmem:[%s1] sm:$0xf]
    %v65 = vld [vmem:[%s3] sm:$0x1]
    %v67 = vperm.slane %v65, 0
    %vm69 = vcmask 31744
    %v71 = vsel %vm69, %v62, 0
    %v74 = vsel %vm69, %v63, 0
    %vm76 = vcmask 1043456
    %v78 = vsel %vm76, %v64, 0
    %80 = vmatpush.msra.mxu0 0.0
    %81 = vmatpush.msra.mxu0 0.0
    %82 = vmatpush.msra.mxu0 0.0
    %83 = vmatpush.msra.mxu0 0.0
    %84 = vmatpush.msra.mxu0 0.0
    %85 = vmatpush.msra.mxu0 0.0
    %86 = vmatpush.msra.mxu0 0.0
    %87 = vmatpush.msra.mxu0 0.0
    %88 = vmatpush.msra.mxu0 0.0
    %89 = vmatpush.msra.mxu0 0.0
    %90 = vmatpush.msra.mxu0 0.0
    %91 = vmatpush.msra.mxu0 0.0
    %92 = vmatpush.msra.mxu0 0.0
    %93 = vmatpush.msra.mxu0 0.0
    %94 = vmatpush.msra.mxu0 0.0
    %95 = vmatpush.msra.mxu0 %v78
    %96 = vmatmul.f32.gmra.mxu0 %v71
    %v97 = vpop.f32.mrf.mxu0
    %v98 = vadd.f32 %v67, %v97
    %99 = vmatmul.f32.gmra.mxu0 %v74
    %v100 = vpop.f32.mrf.mxu0
    %v101 = vadd.f32 %v67, %v100
    %102 = vdwg.mxu0
    %103 = vst [vmem:[#allocation2] sm:$0xff] %v98
    %104 = vst [vmem:[#allocation2 + $0x8] sm:$0xff] %v101
    %v105 = vld [vmem:[%s2] sm:$0xff]
    %v106 = vld [vmem:[%s2 + $0x8] sm:$0xff]
    %v107 = vld [vmem:[%s2 + $0x10] sm:$0xff]
    %v108 = vld [vmem:[%s2 + $0x18] sm:$0xff]
    %v109 = vld [vmem:[#allocation2] sm:$0x1]
    %v110 = vld [vmem:[#allocation2 + $0x8] sm:$0x1]
    %vm111 = vcmask 261120
    %v113 = vsel %vm111, 0.0, 0
    %115 = vmatpush.msra.mxu0 0.0
    %116 = vmatpush.msra.mxu0 0.0
    %117 = vmatpush.msra.mxu0 0.0
    %118 = vmatpush.msra.mxu0 0.0
    %119 = vmatpush.msra.mxu0 0.0
    %120 = vmatpush.msra.mxu0 0.0
    %121 = vmatpush.msra.mxu0 0.0
    %122 = vmatpush.msra.mxu0 0.0
    %123 = vmatpush.msra.mxu0 0.0
    %124 = vmatpush.msra.mxu0 0.0
    %125 = vmatpush.msra.mxu0 0.0
    %126 = vmatpush.msra.mxu0 0.0
    %127 = vmatpush.msra.mxu0 %v108
    %128 = vmatpush.msra.mxu0 %v107
    %129 = vmatpush.msra.mxu0 %v106
    %130 = vmatpush.msra.mxu0 %v105
    %131 = vmatmul.f32.gmra.mxu0 %v113
    %v132 = vpop.f32.mrf.mxu0
    %v133 = vadd.f32 0.0, %v132
    %134 = vdwg.mxu0
    %v136 = vrot.slane %v133, 1
    %v139 = vadd.f32 %v109, %v133
    %v140 = vadd.f32 %v110, %v136
    %v141 = vxor.u32 %v139, 2147483648
    %v142 = vxor.u32 %v140, 2147483648
    %v143 = vmul.f32 %v141, 1.442695
    %v144 = vpow.pop %v143
    %v145 = vmul.f32 %v142, 1.442695
    %v146 = vpow.pop %v145
    %v147 = vadd.f32 %v144, 1.0
    %v148 = vadd.f32 %v146, 1.0
    %v149 = vrcp.pop %v147
    %v150 = vmul.f32 %v147, %v149
    %v151 = vsub.f32 1.0, %v150
    %v152 = vmul.f32 %v149, %v151
    %v153 = vadd.f32 %v149, %v152
    %vm154 = vweird.f32 %v147
    %vm155 = vweird.f32 %v149
    %vm156 = vmor %vm154, %vm155
    %v157 = vsel %vm156, %v149, %v153
    %v158 = vand.u32 2147483647, %v147
    %vm159 = vcmp.eq.f32.partialorder %v158, 8.507059e+37
    %v160 = vand.u32 %v147, 2147483648
    %v161 = vor.u32 1.1754944e-38, %v160
    %v162 = vsel %vm159, %v161, %v157
    %v163 = vmul.f32 1.0, %v162
    %v164 = vrcp.pop %v148
    %v165 = vmul.f32 %v148, %v164
    %v166 = vsub.f32 1.0, %v165
    %v167 = vmul.f32 %v164, %v166
    %v168 = vadd.f32 %v164, %v167
    %vm169 = vweird.f32 %v148
    %vm170 = vweird.f32 %v164
    %vm171 = vmor %vm169, %vm170
    %v172 = vsel %vm171, %v164, %v168
    %v173 = vand.u32 2147483647, %v148
    %vm174 = vcmp.eq.f32.partialorder %v173, 8.507059e+37
    %v175 = vand.u32 %v148, 2147483648
    %v176 = vor.u32 1.1754944e-38, %v175
    %v177 = vsel %vm174, %v176, %v172
    %v178 = vmul.f32 1.0, %v177
    %v179 = vtanh.pop %v139
    %v180 = vtanh.pop %v140
    %v181 = vmul.f32 %v163, 0.0
    %v182 = vmul.f32 %v178, 0.0
    %185 = vrot.lane.b32.xlu0 %v179, 64
    %v186 = vpop.permute.xlu0 %185
    %187 = vrot.lane.b32.xlu0 %v180, 64
    %v188 = vpop.permute.xlu0 %187
    %v191 = vmul.f32 %v163, %v186
    %v192 = vmul.f32 %v178, %v188
    %195 = vrot.lane.b32.xlu0 %v191, 32
    %v196 = vpop.permute.xlu0 %195
    %197 = vrot.lane.b32.xlu0 %v192, 32
    %v198 = vpop.permute.xlu0 %197
    %v201 = vadd.f32 %v181, %v196
    %v202 = vadd.f32 %v182, %v198
    %v203 = vtanh.pop %v201
    %v204 = vtanh.pop %v202
    %207 = vrot.lane.b32.xlu0 %v203, 64
    %v208 = vpop.permute.xlu0 %207
    %209 = vrot.lane.b32.xlu0 %v204, 64
    %v210 = vpop.permute.xlu0 %209
    %v213 = vmul.f32 %v163, %v208
    %v214 = vmul.f32 %v178, %v210
    %217 = vrot.lane.b32.xlu0 %v213, 32
    %v218 = vpop.permute.xlu0 %217
    %219 = vrot.lane.b32.xlu0 %v214, 32
    %v220 = vpop.permute.xlu0 %219
    %vm223 = vcmask 253952
    %224 = vst.msk [vmem:[#allocation3] sm:$0x1] %vm223, %v218
    %225 = vst.msk [vmem:[#allocation3 + $0x8] sm:$0x1] %vm223, %v220
    %v226 = vld [vmem:[#allocation2 + $0x1] sm:$0x1]
    %v227 = vld [vmem:[#allocation2 + $0x9] sm:$0x1]
    %v228 = vrot.slane %v214, 7
    %vm229 = vcmask 1041409
    %v230 = vsel %vm229, %v228, %v213
    %231 = vrot.lane.b32.xlu0 %v230, 32
    %v232 = vpop.permute.xlu0 %231
    %v233 = vsel %vm111, %v232, 0
    %235 = vmatpush.msra.mxu0 0.0
    %236 = vmatpush.msra.mxu0 0.0
    %237 = vmatpush.msra.mxu0 0.0
    %238 = vmatpush.msra.mxu0 0.0
    %239 = vmatpush.msra.mxu0 0.0
    %240 = vmatpush.msra.mxu0 0.0
    %241 = vmatpush.msra.mxu0 0.0
    %242 = vmatpush.msra.mxu0 0.0
    %243 = vmatpush.msra.mxu0 0.0
    %244 = vmatpush.msra.mxu0 0.0
    %245 = vmatpush.msra.mxu0 0.0
    %246 = vmatpush.msra.mxu0 0.0
    %247 = vmatpush.msra.mxu0 %v108
    %248 = vmatpush.msra.mxu0 %v107
    %249 = vmatpush.msra.mxu0 %v106
    %250 = vmatpush.msra.mxu0 %v105
    %251 = vmatmul.f32.gmra.mxu0 %v233
    %v252 = vpop.f32.mrf.mxu0
    %v253 = vadd.f32 0.0, %v252
    %254 = vdwg.mxu0
    %v256 = vrot.slane %v253, 1
    %v259 = vadd.f32 %v226, %v253
    %v260 = vadd.f32 %v227, %v256
    %v261 = vxor.u32 %v259, 2147483648
    %v262 = vxor.u32 %v260, 2147483648
    %v263 = vmul.f32 %v261, 1.442695
    %v264 = vpow.pop %v263
    %v265 = vmul.f32 %v262, 1.442695
    %v266 = vpow.pop %v265
    %v267 = vadd.f32 %v264, 1.0
    %v268 = vadd.f32 %v266, 1.0
    %v269 = vrcp.pop %v267
    %v270 = vmul.f32 %v267, %v269
    %v271 = vsub.f32 1.0, %v270
    %v272 = vmul.f32 %v269, %v271
    %v273 = vadd.f32 %v269, %v272
    %vm274 = vweird.f32 %v267
    %vm275 = vweird.f32 %v269
    %vm276 = vmor %vm274, %vm275
    %v277 = vsel %vm276, %v269, %v273
    %v278 = vand.u32 2147483647, %v267
    %vm279 = vcmp.eq.f32.partialorder %v278, 8.507059e+37
    %v280 = vand.u32 %v267, 2147483648
    %v281 = vor.u32 1.1754944e-38, %v280
    %v282 = vsel %vm279, %v281, %v277
    %v283 = vmul.f32 1.0, %v282
    %v284 = vrcp.pop %v268
    %v285 = vmul.f32 %v268, %v284
    %v286 = vsub.f32 1.0, %v285
    %v287 = vmul.f32 %v284, %v286
    %v288 = vadd.f32 %v284, %v287
    %vm289 = vweird.f32 %v268
    %vm290 = vweird.f32 %v284
    %vm291 = vmor %vm289, %vm290
    %v292 = vsel %vm291, %v284, %v288
    %v293 = vand.u32 2147483647, %v268
    %vm294 = vcmp.eq.f32.partialorder %v293, 8.507059e+37
    %v295 = vand.u32 %v268, 2147483648
    %v296 = vor.u32 1.1754944e-38, %v295
    %v297 = vsel %vm294, %v296, %v292
    %v298 = vmul.f32 1.0, %v297
    %v299 = vtanh.pop %v259
    %v300 = vtanh.pop %v260
    %v301 = vmul.f32 %v283, %v201
    %v302 = vmul.f32 %v298, %v202
    %305 = vrot.lane.b32.xlu0 %v299, 64
    %v306 = vpop.permute.xlu0 %305
    %307 = vrot.lane.b32.xlu0 %v300, 64
    %v308 = vpop.permute.xlu0 %307
    %v311 = vmul.f32 %v283, %v306
    %v312 = vmul.f32 %v298, %v308
    %315 = vrot.lane.b32.xlu0 %v311, 32
    %v316 = vpop.permute.xlu0 %315
    %317 = vrot.lane.b32.xlu0 %v312, 32
    %v318 = vpop.permute.xlu0 %317
    %v321 = vadd.f32 %v301, %v316
    %v322 = vadd.f32 %v302, %v318
    %v323 = vtanh.pop %v321
    %v324 = vtanh.pop %v322
    %327 = vrot.lane.b32.xlu0 %v323, 64
    %v328 = vpop.permute.xlu0 %327
    %329 = vrot.lane.b32.xlu0 %v324, 64
    %v330 = vpop.permute.xlu0 %329
    %v333 = vmul.f32 %v283, %v328
    %v334 = vmul.f32 %v298, %v330
    %337 = vrot.lane.b32.xlu0 %v333, 32
    %v338 = vpop.permute.xlu0 %337
    %339 = vrot.lane.b32.xlu0 %v334, 32
    %v340 = vpop.permute.xlu0 %339
    %343 = vst.msk [vmem:[#allocation3 + $0x1] sm:$0x1] %vm223, %v338
    %344 = vst.msk [vmem:[#allocation3 + $0x9] sm:$0x1] %vm223, %v340
    %v345 = vld [vmem:[#allocation2 + $0x2] sm:$0x1]
    %v346 = vld [vmem:[#allocation2 + $0xa] sm:$0x1]
    %v347 = vrot.slane %v334, 7
    %v348 = vsel %vm229, %v347, %v333
    %349 = vrot.lane.b32.xlu0 %v348, 32
    %v350 = vpop.permute.xlu0 %349
    %v351 = vsel %vm111, %v350, 0
    %353 = vmatpush.msra.mxu0 0.0
    %354 = vmatpush.msra.mxu0 0.0
    %355 = vmatpush.msra.mxu0 0.0
    %356 = vmatpush.msra.mxu0 0.0
    %357 = vmatpush.msra.mxu0 0.0
    %358 = vmatpush.msra.mxu0 0.0
    %359 = vmatpush.msra.mxu0 0.0
    %360 = vmatpush.msra.mxu0 0.0
    %361 = vmatpush.msra.mxu0 0.0
    %362 = vmatpush.msra.mxu0 0.0
    %363 = vmatpush.msra.mxu0 0.0
    %364 = vmatpush.msra.mxu0 0.0
    %365 = vmatpush.msra.mxu0 %v108
    %366 = vmatpush.msra.mxu0 %v107
    %367 = vmatpush.msra.mxu0 %v106
    %368 = vmatpush.msra.mxu0 %v105
    %369 = vmatmul.f32.gmra.mxu0 %v351
    %v370 = vpop.f32.mrf.mxu0
    %v371 = vadd.f32 0.0, %v370
    %372 = vdwg.mxu0
    %v374 = vrot.slane %v371, 1
    %v377 = vadd.f32 %v345, %v371
    %v378 = vadd.f32 %v346, %v374
    %v379 = vxor.u32 %v377, 2147483648
    %v380 = vxor.u32 %v378, 2147483648
    %v381 = vmul.f32 %v379, 1.442695
    %v382 = vpow.pop %v381
    %v383 = vmul.f32 %v380, 1.442695
    %v384 = vpow.pop %v383
    %v385 = vadd.f32 %v382, 1.0
    %v386 = vadd.f32 %v384, 1.0
    %v387 = vrcp.pop %v385
    %v388 = vmul.f32 %v385, %v387
    %v389 = vsub.f32 1.0, %v388
    %v390 = vmul.f32 %v387, %v389
    %v391 = vadd.f32 %v387, %v390
    %vm392 = vweird.f32 %v385
    %vm393 = vweird.f32 %v387
    %vm394 = vmor %vm392, %vm393
    %v395 = vsel %vm394, %v387, %v391
    %v396 = vand.u32 2147483647, %v385
    %vm397 = vcmp.eq.f32.partialorder %v396, 8.507059e+37
    %v398 = vand.u32 %v385, 2147483648
    %v399 = vor.u32 1.1754944e-38, %v398
    %v400 = vsel %vm397, %v399, %v395
    %v401 = vmul.f32 1.0, %v400
    %v402 = vrcp.pop %v386
    %v403 = vmul.f32 %v386, %v402
    %v404 = vsub.f32 1.0, %v403
    %v405 = vmul.f32 %v402, %v404
    %v406 = vadd.f32 %v402, %v405
    %vm407 = vweird.f32 %v386
    %vm408 = vweird.f32 %v402
    %vm409 = vmor %vm407, %vm408
    %v410 = vsel %vm409, %v402, %v406
    %v411 = vand.u32 2147483647, %v386
    %vm412 = vcmp.eq.f32.partialorder %v411, 8.507059e+37
    %v413 = vand.u32 %v386, 2147483648
    %v414 = vor.u32 1.1754944e-38, %v413
    %v415 = vsel %vm412, %v414, %v410
    %v416 = vmul.f32 1.0, %v415
    %v417 = vtanh.pop %v377
    %v418 = vtanh.pop %v378
    %v419 = vmul.f32 %v401, %v321
    %v420 = vmul.f32 %v416, %v322
    %423 = vrot.lane.b32.xlu0 %v417, 64
    %v424 = vpop.permute.xlu0 %423
    %425 = vrot.lane.b32.xlu0 %v418, 64
    %v426 = vpop.permute.xlu0 %425
    %v429 = vmul.f32 %v401, %v424
    %v430 = vmul.f32 %v416, %v426
    %433 = vrot.lane.b32.xlu0 %v429, 32
    %v434 = vpop.permute.xlu0 %433
    %435 = vrot.lane.b32.xlu0 %v430, 32
    %v436 = vpop.permute.xlu0 %435
    %v439 = vadd.f32 %v419, %v434
    %v440 = vadd.f32 %v420, %v436
    %v441 = vtanh.pop %v439
    %v442 = vtanh.pop %v440
    %445 = vrot.lane.b32.xlu0 %v441, 64
    %v446 = vpop.permute.xlu0 %445
    %447 = vrot.lane.b32.xlu0 %v442, 64
    %v448 = vpop.permute.xlu0 %447
    %v451 = vmul.f32 %v401, %v446
    %v452 = vmul.f32 %v416, %v448
    %455 = vrot.lane.b32.xlu0 %v451, 32
    %v456 = vpop.permute.xlu0 %455
    %457 = vrot.lane.b32.xlu0 %v452, 32
    %v458 = vpop.permute.xlu0 %457
    %461 = vst.msk [vmem:[#allocation3 + $0x2] sm:$0x1] %vm223, %v456
    %462 = vst.msk [vmem:[#allocation3 + $0xa] sm:$0x1] %vm223, %v458
    %v463 = vld [vmem:[#allocation2 + $0x3] sm:$0x1]
    %v464 = vld [vmem:[#allocation2 + $0xb] sm:$0x1]
    %v465 = vrot.slane %v452, 7
    %v466 = vsel %vm229, %v465, %v451
    %467 = vrot.lane.b32.xlu0 %v466, 32
    %v468 = vpop.permute.xlu0 %467
    %v469 = vsel %vm111, %v468, 0
    %471 = vmatpush.msra.mxu0 0.0
    %472 = vmatpush.msra.mxu0 0.0
    %473 = vmatpush.msra.mxu0 0.0
    %474 = vmatpush.msra.mxu0 0.0
    %475 = vmatpush.msra.mxu0 0.0
    %476 = vmatpush.msra.mxu0 0.0
    %477 = vmatpush.msra.mxu0 0.0
    %478 = vmatpush.msra.mxu0 0.0
    %479 = vmatpush.msra.mxu0 0.0
    %480 = vmatpush.msra.mxu0 0.0
    %481 = vmatpush.msra.mxu0 0.0
    %482 = vmatpush.msra.mxu0 0.0
    %483 = vmatpush.msra.mxu0 %v108
    %484 = vmatpush.msra.mxu0 %v107
    %485 = vmatpush.msra.mxu0 %v106
    %486 = vmatpush.msra.mxu0 %v105
    %487 = vmatmul.f32.gmra.mxu0 %v469
    %v488 = vpop.f32.mrf.mxu0
    %v489 = vadd.f32 0.0, %v488
    %490 = vdwg.mxu0
    %v492 = vrot.slane %v489, 1
    %v495 = vadd.f32 %v463, %v489
    %v496 = vadd.f32 %v464, %v492
    %v497 = vxor.u32 %v495, 2147483648
    %v498 = vxor.u32 %v496, 2147483648
    %v499 = vmul.f32 %v497, 1.442695
    %v500 = vpow.pop %v499
    %v501 = vmul.f32 %v498, 1.442695
    %v502 = vpow.pop %v501
    %v503 = vadd.f32 %v500, 1.0
    %v504 = vadd.f32 %v502, 1.0
    %v505 = vrcp.pop %v503
    %v506 = vmul.f32 %v503, %v505
    %v507 = vsub.f32 1.0, %v506
    %v508 = vmul.f32 %v505, %v507
    %v509 = vadd.f32 %v505, %v508
    %vm510 = vweird.f32 %v503
    %vm511 = vweird.f32 %v505
    %vm512 = vmor %vm510, %vm511
    %v513 = vsel %vm512, %v505, %v509
    %v514 = vand.u32 2147483647, %v503
    %vm515 = vcmp.eq.f32.partialorder %v514, 8.507059e+37
    %v516 = vand.u32 %v503, 2147483648
    %v517 = vor.u32 1.1754944e-38, %v516
    %v518 = vsel %vm515, %v517, %v513
    %v519 = vmul.f32 1.0, %v518
    %v520 = vrcp.pop %v504
    %v521 = vmul.f32 %v504, %v520
    %v522 = vsub.f32 1.0, %v521
    %v523 = vmul.f32 %v520, %v522
    %v524 = vadd.f32 %v520, %v523
    %vm525 = vweird.f32 %v504
    %vm526 = vweird.f32 %v520
    %vm527 = vmor %vm525, %vm526
    %v528 = vsel %vm527, %v520, %v524
    %v529 = vand.u32 2147483647, %v504
    %vm530 = vcmp.eq.f32.partialorder %v529, 8.507059e+37
    %v531 = vand.u32 %v504, 2147483648
    %v532 = vor.u32 1.1754944e-38, %v531
    %v533 = vsel %vm530, %v532, %v528
    %v534 = vmul.f32 1.0, %v533
    %v535 = vtanh.pop %v495
    %v536 = vtanh.pop %v496
    %v537 = vmul.f32 %v519, %v439
    %v538 = vmul.f32 %v534, %v440
    %541 = vrot.lane.b32.xlu0 %v535, 64
    %v542 = vpop.permute.xlu0 %541
    %543 = vrot.lane.b32.xlu0 %v536, 64
    %v544 = vpop.permute.xlu0 %543
    %v547 = vmul.f32 %v519, %v542
    %v548 = vmul.f32 %v534, %v544
    %551 = vrot.lane.b32.xlu0 %v547, 32
    %v552 = vpop.permute.xlu0 %551
    %553 = vrot.lane.b32.xlu0 %v548, 32
    %v554 = vpop.permute.xlu0 %553
    %v557 = vadd.f32 %v537, %v552
    %v558 = vadd.f32 %v538, %v554
    %v559 = vtanh.pop %v557
    %v560 = vtanh.pop %v558
    %563 = vrot.lane.b32.xlu0 %v559, 64
    %v564 = vpop.permute.xlu0 %563
    %565 = vrot.lane.b32.xlu0 %v560, 64
    %v566 = vpop.permute.xlu0 %565
    %v569 = vmul.f32 %v519, %v564
    %v570 = vmul.f32 %v534, %v566
    %573 = vrot.lane.b32.xlu0 %v569, 32
    %v574 = vpop.permute.xlu0 %573
    %575 = vrot.lane.b32.xlu0 %v570, 32
    %v576 = vpop.permute.xlu0 %575
    %579 = vst.msk [vmem:[#allocation3 + $0x3] sm:$0x1] %vm223, %v574
    %580 = vst.msk [vmem:[#allocation3 + $0xb] sm:$0x1] %vm223, %v576
    %v581 = vld [vmem:[#allocation2 + $0x4] sm:$0x1]
    %v582 = vld [vmem:[#allocation2 + $0xc] sm:$0x1]
    %v583 = vrot.slane %v570, 7
    %v584 = vsel %vm229, %v583, %v569
    %585 = vrot.lane.b32.xlu0 %v584, 32
    %v586 = vpop.permute.xlu0 %585
    %v587 = vsel %vm111, %v586, 0
    %589 = vmatpush.msra.mxu0 0.0
    %590 = vmatpush.msra.mxu0 0.0
    %591 = vmatpush.msra.mxu0 0.0
    %592 = vmatpush.msra.mxu0 0.0
    %593 = vmatpush.msra.mxu0 0.0
    %594 = vmatpush.msra.mxu0 0.0
    %595 = vmatpush.msra.mxu0 0.0
    %596 = vmatpush.msra.mxu0 0.0
    %597 = vmatpush.msra.mxu0 0.0
    %598 = vmatpush.msra.mxu0 0.0
    %599 = vmatpush.msra.mxu0 0.0
    %600 = vmatpush.msra.mxu0 0.0
    %601 = vmatpush.msra.mxu0 %v108
    %602 = vmatpush.msra.mxu0 %v107
    %603 = vmatpush.msra.mxu0 %v106
    %604 = vmatpush.msra.mxu0 %v105
    %605 = vmatmul.f32.gmra.mxu0 %v587
    %v606 = vpop.f32.mrf.mxu0
    %v607 = vadd.f32 0.0, %v606
    %608 = vdwg.mxu0
    %v610 = vrot.slane %v607, 1
    %v613 = vadd.f32 %v581, %v607
    %v614 = vadd.f32 %v582, %v610
    %v615 = vxor.u32 %v613, 2147483648
    %v616 = vxor.u32 %v614, 2147483648
    %v617 = vmul.f32 %v615, 1.442695
    %v618 = vpow.pop %v617
    %v619 = vmul.f32 %v616, 1.442695
    %v620 = vpow.pop %v619
    %v621 = vadd.f32 %v618, 1.0
    %v622 = vadd.f32 %v620, 1.0
    %v623 = vrcp.pop %v621
    %v624 = vmul.f32 %v621, %v623
    %v625 = vsub.f32 1.0, %v624
    %v626 = vmul.f32 %v623, %v625
    %v627 = vadd.f32 %v623, %v626
    %vm628 = vweird.f32 %v621
    %vm629 = vweird.f32 %v623
    %vm630 = vmor %vm628, %vm629
    %v631 = vsel %vm630, %v623, %v627
    %v632 = vand.u32 2147483647, %v621
    %vm633 = vcmp.eq.f32.partialorder %v632, 8.507059e+37
    %v634 = vand.u32 %v621, 2147483648
    %v635 = vor.u32 1.1754944e-38, %v634
    %v636 = vsel %vm633, %v635, %v631
    %v637 = vmul.f32 1.0, %v636
    %v638 = vrcp.pop %v622
    %v639 = vmul.f32 %v622, %v638
    %v640 = vsub.f32 1.0, %v639
    %v641 = vmul.f32 %v638, %v640
    %v642 = vadd.f32 %v638, %v641
    %vm643 = vweird.f32 %v622
    %vm644 = vweird.f32 %v638
    %vm645 = vmor %vm643, %vm644
    %v646 = vsel %vm645, %v638, %v642
    %v647 = vand.u32 2147483647, %v622
    %vm648 = vcmp.eq.f32.partialorder %v647, 8.507059e+37
    %v649 = vand.u32 %v622, 2147483648
    %v650 = vor.u32 1.1754944e-38, %v649
    %v651 = vsel %vm648, %v650, %v646
    %v652 = vmul.f32 1.0, %v651
    %v653 = vtanh.pop %v613
    %v654 = vtanh.pop %v614
    %v655 = vmul.f32 %v637, %v557
    %v656 = vmul.f32 %v652, %v558
    %659 = vrot.lane.b32.xlu0 %v653, 64
    %v660 = vpop.permute.xlu0 %659
    %661 = vrot.lane.b32.xlu0 %v654, 64
    %v662 = vpop.permute.xlu0 %661
    %v665 = vmul.f32 %v637, %v660
    %v666 = vmul.f32 %v652, %v662
    %669 = vrot.lane.b32.xlu0 %v665, 32
    %v670 = vpop.permute.xlu0 %669
    %671 = vrot.lane.b32.xlu0 %v666, 32
    %v672 = vpop.permute.xlu0 %671
    %v675 = vadd.f32 %v655, %v670
    %v676 = vadd.f32 %v656, %v672
    %v677 = vtanh.pop %v675
    %v678 = vtanh.pop %v676
    %681 = vrot.lane.b32.xlu0 %v677, 64
    %v682 = vpop.permute.xlu0 %681
    %683 = vrot.lane.b32.xlu0 %v678, 64
    %v684 = vpop.permute.xlu0 %683
    %v687 = vmul.f32 %v637, %v682
    %v688 = vmul.f32 %v652, %v684
    %691 = vrot.lane.b32.xlu0 %v687, 32
    %v692 = vpop.permute.xlu0 %691
    %693 = vrot.lane.b32.xlu0 %v688, 32
    %v694 = vpop.permute.xlu0 %693
    %697 = vst.msk [vmem:[#allocation3 + $0x4] sm:$0x1] %vm223, %v692
    %698 = vst.msk [vmem:[#allocation3 + $0xc] sm:$0x1] %vm223, %v694
    %v699 = vld [vmem:[#allocation2 + $0x5] sm:$0x1]
    %v700 = vld [vmem:[#allocation2 + $0xd] sm:$0x1]
    %v701 = vrot.slane %v688, 7
    %v702 = vsel %vm229, %v701, %v687
    %703 = vrot.lane.b32.xlu0 %v702, 32
    %v704 = vpop.permute.xlu0 %703
    %v705 = vsel %vm111, %v704, 0
    %707 = vmatpush.msra.mxu0 0.0
    %708 = vmatpush.msra.mxu0 0.0
    %709 = vmatpush.msra.mxu0 0.0
    %710 = vmatpush.msra.mxu0 0.0
    %711 = vmatpush.msra.mxu0 0.0
    %712 = vmatpush.msra.mxu0 0.0
    %713 = vmatpush.msra.mxu0 0.0
    %714 = vmatpush.msra.mxu0 0.0
    %715 = vmatpush.msra.mxu0 0.0
    %716 = vmatpush.msra.mxu0 0.0
    %717 = vmatpush.msra.mxu0 0.0
    %718 = vmatpush.msra.mxu0 0.0
    %719 = vmatpush.msra.mxu0 %v108
    %720 = vmatpush.msra.mxu0 %v107
    %721 = vmatpush.msra.mxu0 %v106
    %722 = vmatpush.msra.mxu0 %v105
    %723 = vmatmul.f32.gmra.mxu0 %v705
    %v724 = vpop.f32.mrf.mxu0
    %v725 = vadd.f32 0.0, %v724
    %726 = vdwg.mxu0
    %v728 = vrot.slane %v725, 1
    %v731 = vadd.f32 %v699, %v725
    %v732 = vadd.f32 %v700, %v728
    %v733 = vxor.u32 %v731, 2147483648
    %v734 = vxor.u32 %v732, 2147483648
    %v735 = vmul.f32 %v733, 1.442695
    %v736 = vpow.pop %v735
    %v737 = vmul.f32 %v734, 1.442695
    %v738 = vpow.pop %v737
    %v739 = vadd.f32 %v736, 1.0
    %v740 = vadd.f32 %v738, 1.0
    %v741 = vrcp.pop %v739
    %v742 = vmul.f32 %v739, %v741
    %v743 = vsub.f32 1.0, %v742
    %v744 = vmul.f32 %v741, %v743
    %v745 = vadd.f32 %v741, %v744
    %vm746 = vweird.f32 %v739
    %vm747 = vweird.f32 %v741
    %vm748 = vmor %vm746, %vm747
    %v749 = vsel %vm748, %v741, %v745
    %v750 = vand.u32 2147483647, %v739
    %vm751 = vcmp.eq.f32.partialorder %v750, 8.507059e+37
    %v752 = vand.u32 %v739, 2147483648
    %v753 = vor.u32 1.1754944e-38, %v752
    %v754 = vsel %vm751, %v753, %v749
    %v755 = vmul.f32 1.0, %v754
    %v756 = vrcp.pop %v740
    %v757 = vmul.f32 %v740, %v756
    %v758 = vsub.f32 1.0, %v757
    %v759 = vmul.f32 %v756, %v758
    %v760 = vadd.f32 %v756, %v759
    %vm761 = vweird.f32 %v740
    %vm762 = vweird.f32 %v756
    %vm763 = vmor %vm761, %vm762
    %v764 = vsel %vm763, %v756, %v760
    %v765 = vand.u32 2147483647, %v740
    %vm766 = vcmp.eq.f32.partialorder %v765, 8.507059e+37
    %v767 = vand.u32 %v740, 2147483648
    %v768 = vor.u32 1.1754944e-38, %v767
    %v769 = vsel %vm766, %v768, %v764
    %v770 = vmul.f32 1.0, %v769
    %v771 = vtanh.pop %v731
    %v772 = vtanh.pop %v732
    %v773 = vmul.f32 %v755, %v675
    %v774 = vmul.f32 %v770, %v676
    %777 = vrot.lane.b32.xlu0 %v771, 64
    %v778 = vpop.permute.xlu0 %777
    %779 = vrot.lane.b32.xlu0 %v772, 64
    %v780 = vpop.permute.xlu0 %779
    %v783 = vmul.f32 %v755, %v778
    %v784 = vmul.f32 %v770, %v780
    %787 = vrot.lane.b32.xlu0 %v783, 32
    %v788 = vpop.permute.xlu0 %787
    %789 = vrot.lane.b32.xlu0 %v784, 32
    %v790 = vpop.permute.xlu0 %789
    %v793 = vadd.f32 %v773, %v788
    %v794 = vadd.f32 %v774, %v790
    %v795 = vtanh.pop %v793
    %v796 = vtanh.pop %v794
    %799 = vrot.lane.b32.xlu0 %v795, 64
    %v800 = vpop.permute.xlu0 %799
    %801 = vrot.lane.b32.xlu0 %v796, 64
    %v802 = vpop.permute.xlu0 %801
    %v805 = vmul.f32 %v755, %v800
    %v806 = vmul.f32 %v770, %v802
    %809 = vrot.lane.b32.xlu0 %v805, 32
    %v810 = vpop.permute.xlu0 %809
    %811 = vrot.lane.b32.xlu0 %v806, 32
    %v812 = vpop.permute.xlu0 %811
    %815 = vst.msk [vmem:[#allocation3 + $0x5] sm:$0x1] %vm223, %v810
    %816 = vst.msk [vmem:[#allocation3 + $0xd] sm:$0x1] %vm223, %v812
    %v817 = vld [vmem:[#allocation2 + $0x6] sm:$0x1]
    %v818 = vld [vmem:[#allocation2 + $0xe] sm:$0x1]
    %v819 = vrot.slane %v806, 7
    %v820 = vsel %vm229, %v819, %v805
    %821 = vrot.lane.b32.xlu0 %v820, 32
    %v822 = vpop.permute.xlu0 %821
    %v823 = vsel %vm111, %v822, 0
    %825 = vmatpush.msra.mxu0 0.0
    %826 = vmatpush.msra.mxu0 0.0
    %827 = vmatpush.msra.mxu0 0.0
    %828 = vmatpush.msra.mxu0 0.0
    %829 = vmatpush.msra.mxu0 0.0
    %830 = vmatpush.msra.mxu0 0.0
    %831 = vmatpush.msra.mxu0 0.0
    %832 = vmatpush.msra.mxu0 0.0
    %833 = vmatpush.msra.mxu0 0.0
    %834 = vmatpush.msra.mxu0 0.0
    %835 = vmatpush.msra.mxu0 0.0
    %836 = vmatpush.msra.mxu0 0.0
    %837 = vmatpush.msra.mxu0 %v108
    %838 = vmatpush.msra.mxu0 %v107
    %839 = vmatpush.msra.mxu0 %v106
    %840 = vmatpush.msra.mxu0 %v105
    %841 = vmatmul.f32.gmra.mxu0 %v823
    %v842 = vpop.f32.mrf.mxu0
    %v843 = vadd.f32 0.0, %v842
    %844 = vdwg.mxu0
    %v846 = vrot.slane %v843, 1
    %v849 = vadd.f32 %v817, %v843
    %v850 = vadd.f32 %v818, %v846
    %v851 = vxor.u32 %v849, 2147483648
    %v852 = vxor.u32 %v850, 2147483648
    %v853 = vmul.f32 %v851, 1.442695
    %v854 = vpow.pop %v853
    %v855 = vmul.f32 %v852, 1.442695
    %v856 = vpow.pop %v855
    %v857 = vadd.f32 %v854, 1.0
    %v858 = vadd.f32 %v856, 1.0
    %v859 = vrcp.pop %v857
    %v860 = vmul.f32 %v857, %v859
    %v861 = vsub.f32 1.0, %v860
    %v862 = vmul.f32 %v859, %v861
    %v863 = vadd.f32 %v859, %v862
    %vm864 = vweird.f32 %v857
    %vm865 = vweird.f32 %v859
    %vm866 = vmor %vm864, %vm865
    %v867 = vsel %vm866, %v859, %v863
    %v868 = vand.u32 2147483647, %v857
    %vm869 = vcmp.eq.f32.partialorder %v868, 8.507059e+37
    %v870 = vand.u32 %v857, 2147483648
    %v871 = vor.u32 1.1754944e-38, %v870
    %v872 = vsel %vm869, %v871, %v867
    %v873 = vmul.f32 1.0, %v872
    %v874 = vrcp.pop %v858
    %v875 = vmul.f32 %v858, %v874
    %v876 = vsub.f32 1.0, %v875
    %v877 = vmul.f32 %v874, %v876
    %v878 = vadd.f32 %v874, %v877
    %vm879 = vweird.f32 %v858
    %vm880 = vweird.f32 %v874
    %vm881 = vmor %vm879, %vm880
    %v882 = vsel %vm881, %v874, %v878
    %v883 = vand.u32 2147483647, %v858
    %vm884 = vcmp.eq.f32.partialorder %v883, 8.507059e+37
    %v885 = vand.u32 %v858, 2147483648
    %v886 = vor.u32 1.1754944e-38, %v885
    %v887 = vsel %vm884, %v886, %v882
    %v888 = vmul.f32 1.0, %v887
    %v889 = vtanh.pop %v849
    %v890 = vtanh.pop %v850
    %v891 = vmul.f32 %v873, %v793
    %v892 = vmul.f32 %v888, %v794
    %895 = vrot.lane.b32.xlu0 %v889, 64
    %v896 = vpop.permute.xlu0 %895
    %897 = vrot.lane.b32.xlu0 %v890, 64
    %v898 = vpop.permute.xlu0 %897
    %v901 = vmul.f32 %v873, %v896
    %v902 = vmul.f32 %v888, %v898
    %905 = vrot.lane.b32.xlu0 %v901, 32
    %v906 = vpop.permute.xlu0 %905
    %907 = vrot.lane.b32.xlu0 %v902, 32
    %v908 = vpop.permute.xlu0 %907
    %v911 = vadd.f32 %v891, %v906
    %v912 = vadd.f32 %v892, %v908
    %v913 = vtanh.pop %v911
    %v914 = vtanh.pop %v912
    %917 = vrot.lane.b32.xlu0 %v913, 64
    %v918 = vpop.permute.xlu0 %917
    %919 = vrot.lane.b32.xlu0 %v914, 64
    %v920 = vpop.permute.xlu0 %919
    %v923 = vmul.f32 %v873, %v918
    %v924 = vmul.f32 %v888, %v920
    %927 = vrot.lane.b32.xlu0 %v923, 32
    %v928 = vpop.permute.xlu0 %927
    %929 = vrot.lane.b32.xlu0 %v924, 32
    %v930 = vpop.permute.xlu0 %929
    %933 = vst.msk [vmem:[#allocation3 + $0x6] sm:$0x1] %vm223, %v928
    %934 = vst.msk [vmem:[#allocation3 + $0xe] sm:$0x1] %vm223, %v930
    %v935 = vld [vmem:[#allocation2 + $0x7] sm:$0x1]
    %v936 = vld [vmem:[#allocation2 + $0xf] sm:$0x1]
    %v937 = vrot.slane %v924, 7
    %v938 = vsel %vm229, %v937, %v923
    %939 = vrot.lane.b32.xlu0 %v938, 32
    %v940 = vpop.permute.xlu0 %939
    %v941 = vsel %vm111, %v940, 0
    %943 = vmatpush.msra.mxu0 0.0
    %944 = vmatpush.msra.mxu0 0.0
    %945 = vmatpush.msra.mxu0 0.0
    %946 = vmatpush.msra.mxu0 0.0
    %947 = vmatpush.msra.mxu0 0.0
    %948 = vmatpush.msra.mxu0 0.0
    %949 = vmatpush.msra.mxu0 0.0
    %950 = vmatpush.msra.mxu0 0.0
    %951 = vmatpush.msra.mxu0 0.0
    %952 = vmatpush.msra.mxu0 0.0
    %953 = vmatpush.msra.mxu0 0.0
    %954 = vmatpush.msra.mxu0 0.0
    %955 = vmatpush.msra.mxu0 %v108
    %956 = vmatpush.msra.mxu0 %v107
    %957 = vmatpush.msra.mxu0 %v106
    %958 = vmatpush.msra.mxu0 %v105
    %959 = vmatmul.f32.gmra.mxu0 %v941
    %v960 = vpop.f32.mrf.mxu0
    %v961 = vadd.f32 0.0, %v960
    %962 = vdwg.mxu0
    %v964 = vrot.slane %v961, 1
    %v967 = vadd.f32 %v935, %v961
    %v968 = vadd.f32 %v936, %v964
    %v969 = vxor.u32 %v967, 2147483648
    %v970 = vxor.u32 %v968, 2147483648
    %v971 = vmul.f32 %v969, 1.442695
    %v972 = vpow.pop %v971
    %v973 = vmul.f32 %v970, 1.442695
    %v974 = vpow.pop %v973
    %v975 = vadd.f32 %v972, 1.0
    %v976 = vadd.f32 %v974, 1.0
    %v977 = vrcp.pop %v975
    %v978 = vmul.f32 %v975, %v977
    %v979 = vsub.f32 1.0, %v978
    %v980 = vmul.f32 %v977, %v979
    %v981 = vadd.f32 %v977, %v980
    %vm982 = vweird.f32 %v975
    %vm983 = vweird.f32 %v977
    %vm984 = vmor %vm982, %vm983
    %v985 = vsel %vm984, %v977, %v981
    %v986 = vand.u32 2147483647, %v975
    %vm987 = vcmp.eq.f32.partialorder %v986, 8.507059e+37
    %v988 = vand.u32 %v975, 2147483648
    %v989 = vor.u32 1.1754944e-38, %v988
    %v990 = vsel %vm987, %v989, %v985
    %v991 = vmul.f32 1.0, %v990
    %v992 = vrcp.pop %v976
    %v993 = vmul.f32 %v976, %v992
    %v994 = vsub.f32 1.0, %v993
    %v995 = vmul.f32 %v992, %v994
    %v996 = vadd.f32 %v992, %v995
    %vm997 = vweird.f32 %v976
    %vm998 = vweird.f32 %v992
    %vm999 = vmor %vm997, %vm998
    %v1000 = vsel %vm999, %v992, %v996
    %v1001 = vand.u32 2147483647, %v976
    %vm1002 = vcmp.eq.f32.partialorder %v1001, 8.507059e+37
    %v1003 = vand.u32 %v976, 2147483648
    %v1004 = vor.u32 1.1754944e-38, %v1003
    %v1005 = vsel %vm1002, %v1004, %v1000
    %v1006 = vmul.f32 1.0, %v1005
    %v1007 = vtanh.pop %v967
    %v1008 = vtanh.pop %v968
    %v1009 = vmul.f32 %v991, %v911
    %v1010 = vmul.f32 %v1006, %v912
    %1013 = vrot.lane.b32.xlu0 %v1007, 64
    %v1014 = vpop.permute.xlu0 %1013
    %1015 = vrot.lane.b32.xlu0 %v1008, 64
    %v1016 = vpop.permute.xlu0 %1015
    %v1019 = vmul.f32 %v991, %v1014
    %v1020 = vmul.f32 %v1006, %v1016
    %1023 = vrot.lane.b32.xlu0 %v1019, 32
    %v1024 = vpop.permute.xlu0 %1023
    %1025 = vrot.lane.b32.xlu0 %v1020, 32
    %v1026 = vpop.permute.xlu0 %1025
    %v1029 = vadd.f32 %v1009, %v1024
    %v1030 = vadd.f32 %v1010, %v1026
    %v1031 = vtanh.pop %v1029
    %v1032 = vtanh.pop %v1030
    %1035 = vrot.lane.b32.xlu0 %v1031, 64
    %v1036 = vpop.permute.xlu0 %1035
    %1037 = vrot.lane.b32.xlu0 %v1032, 64
    %v1038 = vpop.permute.xlu0 %1037
    %v1041 = vmul.f32 %v991, %v1036
    %v1042 = vmul.f32 %v1006, %v1038
    %1045 = vrot.lane.b32.xlu0 %v1041, 32
    %v1046 = vpop.permute.xlu0 %1045
    %1047 = vrot.lane.b32.xlu0 %v1042, 32
    %v1048 = vpop.permute.xlu0 %1047
    %1051 = vst.msk [vmem:[#allocation3 + $0x7] sm:$0x1] %vm223, %v1046
    %1052 = vst.msk [vmem:[#allocation3 + $0xf] sm:$0x1] %vm223, %v1048
    %v1053 = vld [vmem:[#allocation3] sm:$0xff]
    %v1054 = vld [vmem:[#allocation3 + $0x8] sm:$0xff]
    %v1055 = vld [vmem:[%s4] sm:$0xff]
    %v1056 = vld [vmem:[%s4 + $0x8] sm:$0xff]
    %v1057 = vld [vmem:[%s4 + $0x10] sm:$0xff]
    %v1058 = vld [vmem:[%s4 + $0x18] sm:$0xff]
    %v1059 = vld [vmem:[%s6] sm:$0x1]
    %v1061 = vperm.slane %v1059, 0
    %v1064 = vsel %vm111, %v1053, 0
    %v1067 = vsel %vm111, %v1054, 0
    %1069 = vmatpush.msra.mxu0 0.0
    %1070 = vmatpush.msra.mxu0 0.0
    %1071 = vmatpush.msra.mxu0 0.0
    %1072 = vmatpush.msra.mxu0 0.0
    %1073 = vmatpush.msra.mxu0 0.0
    %1074 = vmatpush.msra.mxu0 0.0
    %1075 = vmatpush.msra.mxu0 0.0
    %1076 = vmatpush.msra.mxu0 0.0
    %1077 = vmatpush.msra.mxu0 0.0
    %1078 = vmatpush.msra.mxu0 0.0
    %1079 = vmatpush.msra.mxu0 0.0
    %1080 = vmatpush.msra.mxu0 0.0
    %1081 = vmatpush.msra.mxu0 %v1058
    %1082 = vmatpush.msra.mxu0 %v1057
    %1083 = vmatpush.msra.mxu0 %v1056
    %1084 = vmatpush.msra.mxu0 %v1055
    %1085 = vmatmul.f32.gmra.mxu0 %v1064
    %v1086 = vpop.f32.mrf.mxu0
    %v1087 = vadd.f32 %v1061, %v1086
    %1088 = vmatmul.f32.gmra.mxu0 %v1067
    %v1089 = vpop.f32.mrf.mxu0
    %v1090 = vadd.f32 %v1061, %v1089
    %1091 = vdwg.mxu0
    %1092 = vst [vmem:[#allocation2] sm:$0xff] %v1087
    %1093 = vst [vmem:[#allocation2 + $0x8] sm:$0xff] %v1090
    %v1094 = vld [vmem:[%s5] sm:$0xff]
    %v1095 = vld [vmem:[%s5 + $0x8] sm:$0xff]
    %v1096 = vld [vmem:[%s5 + $0x10] sm:$0xff]
    %v1097 = vld [vmem:[%s5 + $0x18] sm:$0xff]
    %v1098 = vld [vmem:[#allocation2] sm:$0x1]
    %v1099 = vld [vmem:[#allocation2 + $0x8] sm:$0x1]
    %1100 = vmatpush.msra.mxu0 0.0
    %1101 = vmatpush.msra.mxu0 0.0
    %1102 = vmatpush.msra.mxu0 0.0
    %1103 = vmatpush.msra.mxu0 0.0
    %1104 = vmatpush.msra.mxu0 0.0
    %1105 = vmatpush.msra.mxu0 0.0
    %1106 = vmatpush.msra.mxu0 0.0
    %1107 = vmatpush.msra.mxu0 0.0
    %1108 = vmatpush.msra.mxu0 0.0
    %1109 = vmatpush.msra.mxu0 0.0
    %1110 = vmatpush.msra.mxu0 0.0
    %1111 = vmatpush.msra.mxu0 0.0
    %1112 = vmatpush.msra.mxu0 %v1097
    %1113 = vmatpush.msra.mxu0 %v1096
    %1114 = vmatpush.msra.mxu0 %v1095
    %1115 = vmatpush.msra.mxu0 %v1094
    %1116 = vmatmul.f32.gmra.mxu0 %v113
    %v1117 = vpop.f32.mrf.mxu0
    %v1118 = vadd.f32 0.0, %v1117
    %1119 = vdwg.mxu0
    %v1121 = vrot.slane %v1118, 1
    %v1124 = vadd.f32 %v1098, %v1118
    %v1125 = vadd.f32 %v1099, %v1121
    %v1126 = vxor.u32 %v1124, 2147483648
    %v1127 = vxor.u32 %v1125, 2147483648
    %v1128 = vmul.f32 %v1126, 1.442695
    %v1129 = vpow.pop %v1128
    %v1130 = vmul.f32 %v1127, 1.442695
    %v1131 = vpow.pop %v1130
    %v1132 = vadd.f32 %v1129, 1.0
    %v1133 = vadd.f32 %v1131, 1.0
    %v1134 = vrcp.pop %v1132
    %v1135 = vmul.f32 %v1132, %v1134
    %v1136 = vsub.f32 1.0, %v1135
    %v1137 = vmul.f32 %v1134, %v1136
    %v1138 = vadd.f32 %v1134, %v1137
    %vm1139 = vweird.f32 %v1132
    %vm1140 = vweird.f32 %v1134
    %vm1141 = vmor %vm1139, %vm1140
    %v1142 = vsel %vm1141, %v1134, %v1138
    %v1143 = vand.u32 2147483647, %v1132
    %vm1144 = vcmp.eq.f32.partialorder %v1143, 8.507059e+37
    %v1145 = vand.u32 %v1132, 2147483648
    %v1146 = vor.u32 1.1754944e-38, %v1145
    %v1147 = vsel %vm1144, %v1146, %v1142
    %v1148 = vmul.f32 1.0, %v1147
    %v1149 = vrcp.pop %v1133
    %v1150 = vmul.f32 %v1133, %v1149
    %v1151 = vsub.f32 1.0, %v1150
    %v1152 = vmul.f32 %v1149, %v1151
    %v1153 = vadd.f32 %v1149, %v1152
    %vm1154 = vweird.f32 %v1133
    %vm1155 = vweird.f32 %v1149
    %vm1156 = vmor %vm1154, %vm1155
    %v1157 = vsel %vm1156, %v1149, %v1153
    %v1158 = vand.u32 2147483647, %v1133
    %vm1159 = vcmp.eq.f32.partialorder %v1158, 8.507059e+37
    %v1160 = vand.u32 %v1133, 2147483648
    %v1161 = vor.u32 1.1754944e-38, %v1160
    %v1162 = vsel %vm1159, %v1161, %v1157
    %v1163 = vmul.f32 1.0, %v1162
    %v1164 = vtanh.pop %v1124
    %v1165 = vtanh.pop %v1125
    %v1166 = vmul.f32 %v1148, 0.0
    %v1167 = vmul.f32 %v1163, 0.0
    %1170 = vrot.lane.b32.xlu0 %v1164, 64
    %v1171 = vpop.permute.xlu0 %1170
    %1172 = vrot.lane.b32.xlu0 %v1165, 64
    %v1173 = vpop.permute.xlu0 %1172
    %v1176 = vmul.f32 %v1148, %v1171
    %v1177 = vmul.f32 %v1163, %v1173
    %1180 = vrot.lane.b32.xlu0 %v1176, 32
    %v1181 = vpop.permute.xlu0 %1180
    %1182 = vrot.lane.b32.xlu0 %v1177, 32
    %v1183 = vpop.permute.xlu0 %1182
    %v1186 = vadd.f32 %v1166, %v1181
    %v1187 = vadd.f32 %v1167, %v1183
    %v1188 = vtanh.pop %v1186
    %v1189 = vtanh.pop %v1187
    %1192 = vrot.lane.b32.xlu0 %v1188, 64
    %v1193 = vpop.permute.xlu0 %1192
    %1194 = vrot.lane.b32.xlu0 %v1189, 64
    %v1195 = vpop.permute.xlu0 %1194
    %v1198 = vmul.f32 %v1148, %v1193
    %v1199 = vmul.f32 %v1163, %v1195
    %1202 = vrot.lane.b32.xlu0 %v1198, 32
    %v1203 = vpop.permute.xlu0 %1202
    %1204 = vrot.lane.b32.xlu0 %v1199, 32
    %v1205 = vpop.permute.xlu0 %1204
    %1208 = vst.msk [vmem:[#allocation3] sm:$0x1] %vm223, %v1203
    %1209 = vst.msk [vmem:[#allocation3 + $0x8] sm:$0x1] %vm223, %v1205
    %v1210 = vld [vmem:[#allocation2 + $0x1] sm:$0x1]
    %v1211 = vld [vmem:[#allocation2 + $0x9] sm:$0x1]
    %v1212 = vrot.slane %v1199, 7
    %v1213 = vsel %vm229, %v1212, %v1198
    %1214 = vrot.lane.b32.xlu0 %v1213, 32
    %v1215 = vpop.permute.xlu0 %1214
    %v1216 = vsel %vm111, %v1215, 0
    %1218 = vmatpush.msra.mxu0 0.0
    %1219 = vmatpush.msra.mxu0 0.0
    %1220 = vmatpush.msra.mxu0 0.0
    %1221 = vmatpush.msra.mxu0 0.0
    %1222 = vmatpush.msra.mxu0 0.0
    %1223 = vmatpush.msra.mxu0 0.0
    %1224 = vmatpush.msra.mxu0 0.0
    %1225 = vmatpush.msra.mxu0 0.0
    %1226 = vmatpush.msra.mxu0 0.0
    %1227 = vmatpush.msra.mxu0 0.0
    %1228 = vmatpush.msra.mxu0 0.0
    %1229 = vmatpush.msra.mxu0 0.0
    %1230 = vmatpush.msra.mxu0 %v1097
    %1231 = vmatpush.msra.mxu0 %v1096
    %1232 = vmatpush.msra.mxu0 %v1095
    %1233 = vmatpush.msra.mxu0 %v1094
    %1234 = vmatmul.f32.gmra.mxu0 %v1216
    %v1235 = vpop.f32.mrf.mxu0
    %v1236 = vadd.f32 0.0, %v1235
    %1237 = vdwg.mxu0
    %v1239 = vrot.slane %v1236, 1
    %v1242 = vadd.f32 %v1210, %v1236
    %v1243 = vadd.f32 %v1211, %v1239
    %v1244 = vxor.u32 %v1242, 2147483648
    %v1245 = vxor.u32 %v1243, 2147483648
    %v1246 = vmul.f32 %v1244, 1.442695
    %v1247 = vpow.pop %v1246
    %v1248 = vmul.f32 %v1245, 1.442695
    %v1249 = vpow.pop %v1248
    %v1250 = vadd.f32 %v1247, 1.0
    %v1251 = vadd.f32 %v1249, 1.0
    %v1252 = vrcp.pop %v1250
    %v1253 = vmul.f32 %v1250, %v1252
    %v1254 = vsub.f32 1.0, %v1253
    %v1255 = vmul.f32 %v1252, %v1254
    %v1256 = vadd.f32 %v1252, %v1255
    %vm1257 = vweird.f32 %v1250
    %vm1258 = vweird.f32 %v1252
    %vm1259 = vmor %vm1257, %vm1258
    %v1260 = vsel %vm1259, %v1252, %v1256
    %v1261 = vand.u32 2147483647, %v1250
    %vm1262 = vcmp.eq.f32.partialorder %v1261, 8.507059e+37
    %v1263 = vand.u32 %v1250, 2147483648
    %v1264 = vor.u32 1.1754944e-38, %v1263
    %v1265 = vsel %vm1262, %v1264, %v1260
    %v1266 = vmul.f32 1.0, %v1265
    %v1267 = vrcp.pop %v1251
    %v1268 = vmul.f32 %v1251, %v1267
    %v1269 = vsub.f32 1.0, %v1268
    %v1270 = vmul.f32 %v1267, %v1269
    %v1271 = vadd.f32 %v1267, %v1270
    %vm1272 = vweird.f32 %v1251
    %vm1273 = vweird.f32 %v1267
    %vm1274 = vmor %vm1272, %vm1273
    %v1275 = vsel %vm1274, %v1267, %v1271
    %v1276 = vand.u32 2147483647, %v1251
    %vm1277 = vcmp.eq.f32.partialorder %v1276, 8.507059e+37
    %v1278 = vand.u32 %v1251, 2147483648
    %v1279 = vor.u32 1.1754944e-38, %v1278
    %v1280 = vsel %vm1277, %v1279, %v1275
    %v1281 = vmul.f32 1.0, %v1280
    %v1282 = vtanh.pop %v1242
    %v1283 = vtanh.pop %v1243
    %v1284 = vmul.f32 %v1266, %v1186
    %v1285 = vmul.f32 %v1281, %v1187
    %1288 = vrot.lane.b32.xlu0 %v1282, 64
    %v1289 = vpop.permute.xlu0 %1288
    %1290 = vrot.lane.b32.xlu0 %v1283, 64
    %v1291 = vpop.permute.xlu0 %1290
    %v1294 = vmul.f32 %v1266, %v1289
    %v1295 = vmul.f32 %v1281, %v1291
    %1298 = vrot.lane.b32.xlu0 %v1294, 32
    %v1299 = vpop.permute.xlu0 %1298
    %1300 = vrot.lane.b32.xlu0 %v1295, 32
    %v1301 = vpop.permute.xlu0 %1300
    %v1304 = vadd.f32 %v1284, %v1299
    %v1305 = vadd.f32 %v1285, %v1301
    %v1306 = vtanh.pop %v1304
    %v1307 = vtanh.pop %v1305
    %1310 = vrot.lane.b32.xlu0 %v1306, 64
    %v1311 = vpop.permute.xlu0 %1310
    %1312 = vrot.lane.b32.xlu0 %v1307, 64
    %v1313 = vpop.permute.xlu0 %1312
    %v1316 = vmul.f32 %v1266, %v1311
    %v1317 = vmul.f32 %v1281, %v1313
    %1320 = vrot.lane.b32.xlu0 %v1316, 32
    %v1321 = vpop.permute.xlu0 %1320
    %1322 = vrot.lane.b32.xlu0 %v1317, 32
    %v1323 = vpop.permute.xlu0 %1322
    %1326 = vst.msk [vmem:[#allocation3 + $0x1] sm:$0x1] %vm223, %v1321
    %1327 = vst.msk [vmem:[#allocation3 + $0x9] sm:$0x1] %vm223, %v1323
    %v1328 = vld [vmem:[#allocation2 + $0x2] sm:$0x1]
    %v1329 = vld [vmem:[#allocation2 + $0xa] sm:$0x1]
    %v1330 = vrot.slane %v1317, 7
    %v1331 = vsel %vm229, %v1330, %v1316
    %1332 = vrot.lane.b32.xlu0 %v1331, 32
    %v1333 = vpop.permute.xlu0 %1332
    %v1334 = vsel %vm111, %v1333, 0
    %1336 = vmatpush.msra.mxu0 0.0
    %1337 = vmatpush.msra.mxu0 0.0
    %1338 = vmatpush.msra.mxu0 0.0
    %1339 = vmatpush.msra.mxu0 0.0
    %1340 = vmatpush.msra.mxu0 0.0
    %1341 = vmatpush.msra.mxu0 0.0
    %1342 = vmatpush.msra.mxu0 0.0
    %1343 = vmatpush.msra.mxu0 0.0
    %1344 = vmatpush.msra.mxu0 0.0
    %1345 = vmatpush.msra.mxu0 0.0
    %1346 = vmatpush.msra.mxu0 0.0
    %1347 = vmatpush.msra.mxu0 0.0
    %1348 = vmatpush.msra.mxu0 %v1097
    %1349 = vmatpush.msra.mxu0 %v1096
    %1350 = vmatpush.msra.mxu0 %v1095
    %1351 = vmatpush.msra.mxu0 %v1094
    %1352 = vmatmul.f32.gmra.mxu0 %v1334
    %v1353 = vpop.f32.mrf.mxu0
    %v1354 = vadd.f32 0.0, %v1353
    %1355 = vdwg.mxu0
    %v1357 = vrot.slane %v1354, 1
    %v1360 = vadd.f32 %v1328, %v1354
    %v1361 = vadd.f32 %v1329, %v1357
    %v1362 = vxor.u32 %v1360, 2147483648
    %v1363 = vxor.u32 %v1361, 2147483648
    %v1364 = vmul.f32 %v1362, 1.442695
    %v1365 = vpow.pop %v1364
    %v1366 = vmul.f32 %v1363, 1.442695
    %v1367 = vpow.pop %v1366
    %v1368 = vadd.f32 %v1365, 1.0
    %v1369 = vadd.f32 %v1367, 1.0
    %v1370 = vrcp.pop %v1368
    %v1371 = vmul.f32 %v1368, %v1370
    %v1372 = vsub.f32 1.0, %v1371
    %v1373 = vmul.f32 %v1370, %v1372
    %v1374 = vadd.f32 %v1370, %v1373
    %vm1375 = vweird.f32 %v1368
    %vm1376 = vweird.f32 %v1370
    %vm1377 = vmor %vm1375, %vm1376
    %v1378 = vsel %vm1377, %v1370, %v1374
    %v1379 = vand.u32 2147483647, %v1368
    %vm1380 = vcmp.eq.f32.partialorder %v1379, 8.507059e+37
    %v1381 = vand.u32 %v1368, 2147483648
    %v1382 = vor.u32 1.1754944e-38, %v1381
    %v1383 = vsel %vm1380, %v1382, %v1378
    %v1384 = vmul.f32 1.0, %v1383
    %v1385 = vrcp.pop %v1369
    %v1386 = vmul.f32 %v1369, %v1385
    %v1387 = vsub.f32 1.0, %v1386
    %v1388 = vmul.f32 %v1385, %v1387
    %v1389 = vadd.f32 %v1385, %v1388
    %vm1390 = vweird.f32 %v1369
    %vm1391 = vweird.f32 %v1385
    %vm1392 = vmor %vm1390, %vm1391
    %v1393 = vsel %vm1392, %v1385, %v1389
    %v1394 = vand.u32 2147483647, %v1369
    %vm1395 = vcmp.eq.f32.partialorder %v1394, 8.507059e+37
    %v1396 = vand.u32 %v1369, 2147483648
    %v1397 = vor.u32 1.1754944e-38, %v1396
    %v1398 = vsel %vm1395, %v1397, %v1393
    %v1399 = vmul.f32 1.0, %v1398
    %v1400 = vtanh.pop %v1360
    %v1401 = vtanh.pop %v1361
    %v1402 = vmul.f32 %v1384, %v1304
    %v1403 = vmul.f32 %v1399, %v1305
    %1406 = vrot.lane.b32.xlu0 %v1400, 64
    %v1407 = vpop.permute.xlu0 %1406
    %1408 = vrot.lane.b32.xlu0 %v1401, 64
    %v1409 = vpop.permute.xlu0 %1408
    %v1412 = vmul.f32 %v1384, %v1407
    %v1413 = vmul.f32 %v1399, %v1409
    %1416 = vrot.lane.b32.xlu0 %v1412, 32
    %v1417 = vpop.permute.xlu0 %1416
    %1418 = vrot.lane.b32.xlu0 %v1413, 32
    %v1419 = vpop.permute.xlu0 %1418
    %v1422 = vadd.f32 %v1402, %v1417
    %v1423 = vadd.f32 %v1403, %v1419
    %v1424 = vtanh.pop %v1422
    %v1425 = vtanh.pop %v1423
    %1428 = vrot.lane.b32.xlu0 %v1424, 64
    %v1429 = vpop.permute.xlu0 %1428
    %1430 = vrot.lane.b32.xlu0 %v1425, 64
    %v1431 = vpop.permute.xlu0 %1430
    %v1434 = vmul.f32 %v1384, %v1429
    %v1435 = vmul.f32 %v1399, %v1431
    %1438 = vrot.lane.b32.xlu0 %v1434, 32
    %v1439 = vpop.permute.xlu0 %1438
    %1440 = vrot.lane.b32.xlu0 %v1435, 32
    %v1441 = vpop.permute.xlu0 %1440
    %1444 = vst.msk [vmem:[#allocation3 + $0x2] sm:$0x1] %vm223, %v1439
    %1445 = vst.msk [vmem:[#allocation3 + $0xa] sm:$0x1] %vm223, %v1441
    %v1446 = vld [vmem:[#allocation2 + $0x3] sm:$0x1]
    %v1447 = vld [vmem:[#allocation2 + $0xb] sm:$0x1]
    %v1448 = vrot.slane %v1435, 7
    %v1449 = vsel %vm229, %v1448, %v1434
    %1450 = vrot.lane.b32.xlu0 %v1449, 32
    %v1451 = vpop.permute.xlu0 %1450
    %v1452 = vsel %vm111, %v1451, 0
    %1454 = vmatpush.msra.mxu0 0.0
    %1455 = vmatpush.msra.mxu0 0.0
    %1456 = vmatpush.msra.mxu0 0.0
    %1457 = vmatpush.msra.mxu0 0.0
    %1458 = vmatpush.msra.mxu0 0.0
    %1459 = vmatpush.msra.mxu0 0.0
    %1460 = vmatpush.msra.mxu0 0.0
    %1461 = vmatpush.msra.mxu0 0.0
    %1462 = vmatpush.msra.mxu0 0.0
    %1463 = vmatpush.msra.mxu0 0.0
    %1464 = vmatpush.msra.mxu0 0.0
    %1465 = vmatpush.msra.mxu0 0.0
    %1466 = vmatpush.msra.mxu0 %v1097
    %1467 = vmatpush.msra.mxu0 %v1096
    %1468 = vmatpush.msra.mxu0 %v1095
    %1469 = vmatpush.msra.mxu0 %v1094
    %1470 = vmatmul.f32.gmra.mxu0 %v1452
    %v1471 = vpop.f32.mrf.mxu0
    %v1472 = vadd.f32 0.0, %v1471
    %1473 = vdwg.mxu0
    %v1475 = vrot.slane %v1472, 1
    %v1478 = vadd.f32 %v1446, %v1472
    %v1479 = vadd.f32 %v1447, %v1475
    %v1480 = vxor.u32 %v1478, 2147483648
    %v1481 = vxor.u32 %v1479, 2147483648
    %v1482 = vmul.f32 %v1480, 1.442695
    %v1483 = vpow.pop %v1482
    %v1484 = vmul.f32 %v1481, 1.442695
    %v1485 = vpow.pop %v1484
    %v1486 = vadd.f32 %v1483, 1.0
    %v1487 = vadd.f32 %v1485, 1.0
    %v1488 = vrcp.pop %v1486
    %v1489 = vmul.f32 %v1486, %v1488
    %v1490 = vsub.f32 1.0, %v1489
    %v1491 = vmul.f32 %v1488, %v1490
    %v1492 = vadd.f32 %v1488, %v1491
    %vm1493 = vweird.f32 %v1486
    %vm1494 = vweird.f32 %v1488
    %vm1495 = vmor %vm1493, %vm1494
    %v1496 = vsel %vm1495, %v1488, %v1492
    %v1497 = vand.u32 2147483647, %v1486
    %vm1498 = vcmp.eq.f32.partialorder %v1497, 8.507059e+37
    %v1499 = vand.u32 %v1486, 2147483648
    %v1500 = vor.u32 1.1754944e-38, %v1499
    %v1501 = vsel %vm1498, %v1500, %v1496
    %v1502 = vmul.f32 1.0, %v1501
    %v1503 = vrcp.pop %v1487
    %v1504 = vmul.f32 %v1487, %v1503
    %v1505 = vsub.f32 1.0, %v1504
    %v1506 = vmul.f32 %v1503, %v1505
    %v1507 = vadd.f32 %v1503, %v1506
    %vm1508 = vweird.f32 %v1487
    %vm1509 = vweird.f32 %v1503
    %vm1510 = vmor %vm1508, %vm1509
    %v1511 = vsel %vm1510, %v1503, %v1507
    %v1512 = vand.u32 2147483647, %v1487
    %vm1513 = vcmp.eq.f32.partialorder %v1512, 8.507059e+37
    %v1514 = vand.u32 %v1487, 2147483648
    %v1515 = vor.u32 1.1754944e-38, %v1514
    %v1516 = vsel %vm1513, %v1515, %v1511
    %v1517 = vmul.f32 1.0, %v1516
    %v1518 = vtanh.pop %v1478
    %v1519 = vtanh.pop %v1479
    %v1520 = vmul.f32 %v1502, %v1422
    %v1521 = vmul.f32 %v1517, %v1423
    %1524 = vrot.lane.b32.xlu0 %v1518, 64
    %v1525 = vpop.permute.xlu0 %1524
    %1526 = vrot.lane.b32.xlu0 %v1519, 64
    %v1527 = vpop.permute.xlu0 %1526
    %v1530 = vmul.f32 %v1502, %v1525
    %v1531 = vmul.f32 %v1517, %v1527
    %1534 = vrot.lane.b32.xlu0 %v1530, 32
    %v1535 = vpop.permute.xlu0 %1534
    %1536 = vrot.lane.b32.xlu0 %v1531, 32
    %v1537 = vpop.permute.xlu0 %1536
    %v1540 = vadd.f32 %v1520, %v1535
    %v1541 = vadd.f32 %v1521, %v1537
    %v1542 = vtanh.pop %v1540
    %v1543 = vtanh.pop %v1541
    %1546 = vrot.lane.b32.xlu0 %v1542, 64
    %v1547 = vpop.permute.xlu0 %1546
    %1548 = vrot.lane.b32.xlu0 %v1543, 64
    %v1549 = vpop.permute.xlu0 %1548
    %v1552 = vmul.f32 %v1502, %v1547
    %v1553 = vmul.f32 %v1517, %v1549
    %1556 = vrot.lane.b32.xlu0 %v1552, 32
    %v1557 = vpop.permute.xlu0 %1556
    %1558 = vrot.lane.b32.xlu0 %v1553, 32
    %v1559 = vpop.permute.xlu0 %1558
    %1562 = vst.msk [vmem:[#allocation3 + $0x3] sm:$0x1] %vm223, %v1557
    %1563 = vst.msk [vmem:[#allocation3 + $0xb] sm:$0x1] %vm223, %v1559
    %v1564 = vld [vmem:[#allocation2 + $0x4] sm:$0x1]
    %v1565 = vld [vmem:[#allocation2 + $0xc] sm:$0x1]
    %v1566 = vrot.slane %v1553, 7
    %v1567 = vsel %vm229, %v1566, %v1552
    %1568 = vrot.lane.b32.xlu0 %v1567, 32
    %v1569 = vpop.permute.xlu0 %1568
    %v1570 = vsel %vm111, %v1569, 0
    %1572 = vmatpush.msra.mxu0 0.0
    %1573 = vmatpush.msra.mxu0 0.0
    %1574 = vmatpush.msra.mxu0 0.0
    %1575 = vmatpush.msra.mxu0 0.0
    %1576 = vmatpush.msra.mxu0 0.0
    %1577 = vmatpush.msra.mxu0 0.0
    %1578 = vmatpush.msra.mxu0 0.0
    %1579 = vmatpush.msra.mxu0 0.0
    %1580 = vmatpush.msra.mxu0 0.0
    %1581 = vmatpush.msra.mxu0 0.0
    %1582 = vmatpush.msra.mxu0 0.0
    %1583 = vmatpush.msra.mxu0 0.0
    %1584 = vmatpush.msra.mxu0 %v1097
    %1585 = vmatpush.msra.mxu0 %v1096
    %1586 = vmatpush.msra.mxu0 %v1095
    %1587 = vmatpush.msra.mxu0 %v1094
    %1588 = vmatmul.f32.gmra.mxu0 %v1570
    %v1589 = vpop.f32.mrf.mxu0
    %v1590 = vadd.f32 0.0, %v1589
    %1591 = vdwg.mxu0
    %v1593 = vrot.slane %v1590, 1
    %v1596 = vadd.f32 %v1564, %v1590
    %v1597 = vadd.f32 %v1565, %v1593
    %v1598 = vxor.u32 %v1596, 2147483648
    %v1599 = vxor.u32 %v1597, 2147483648
    %v1600 = vmul.f32 %v1598, 1.442695
    %v1601 = vpow.pop %v1600
    %v1602 = vmul.f32 %v1599, 1.442695
    %v1603 = vpow.pop %v1602
    %v1604 = vadd.f32 %v1601, 1.0
    %v1605 = vadd.f32 %v1603, 1.0
    %v1606 = vrcp.pop %v1604
    %v1607 = vmul.f32 %v1604, %v1606
    %v1608 = vsub.f32 1.0, %v1607
    %v1609 = vmul.f32 %v1606, %v1608
    %v1610 = vadd.f32 %v1606, %v1609
    %vm1611 = vweird.f32 %v1604
    %vm1612 = vweird.f32 %v1606
    %vm1613 = vmor %vm1611, %vm1612
    %v1614 = vsel %vm1613, %v1606, %v1610
    %v1615 = vand.u32 2147483647, %v1604
    %vm1616 = vcmp.eq.f32.partialorder %v1615, 8.507059e+37
    %v1617 = vand.u32 %v1604, 2147483648
    %v1618 = vor.u32 1.1754944e-38, %v1617
    %v1619 = vsel %vm1616, %v1618, %v1614
    %v1620 = vmul.f32 1.0, %v1619
    %v1621 = vrcp.pop %v1605
    %v1622 = vmul.f32 %v1605, %v1621
    %v1623 = vsub.f32 1.0, %v1622
    %v1624 = vmul.f32 %v1621, %v1623
    %v1625 = vadd.f32 %v1621, %v1624
    %vm1626 = vweird.f32 %v1605
    %vm1627 = vweird.f32 %v1621
    %vm1628 = vmor %vm1626, %vm1627
    %v1629 = vsel %vm1628, %v1621, %v1625
    %v1630 = vand.u32 2147483647, %v1605
    %vm1631 = vcmp.eq.f32.partialorder %v1630, 8.507059e+37
    %v1632 = vand.u32 %v1605, 2147483648
    %v1633 = vor.u32 1.1754944e-38, %v1632
    %v1634 = vsel %vm1631, %v1633, %v1629
    %v1635 = vmul.f32 1.0, %v1634
    %v1636 = vtanh.pop %v1596
    %v1637 = vtanh.pop %v1597
    %v1638 = vmul.f32 %v1620, %v1540
    %v1639 = vmul.f32 %v1635, %v1541
    %1642 = vrot.lane.b32.xlu0 %v1636, 64
    %v1643 = vpop.permute.xlu0 %1642
    %1644 = vrot.lane.b32.xlu0 %v1637, 64
    %v1645 = vpop.permute.xlu0 %1644
    %v1648 = vmul.f32 %v1620, %v1643
    %v1649 = vmul.f32 %v1635, %v1645
    %1652 = vrot.lane.b32.xlu0 %v1648, 32
    %v1653 = vpop.permute.xlu0 %1652
    %1654 = vrot.lane.b32.xlu0 %v1649, 32
    %v1655 = vpop.permute.xlu0 %1654
    %v1658 = vadd.f32 %v1638, %v1653
    %v1659 = vadd.f32 %v1639, %v1655
    %v1660 = vtanh.pop %v1658
    %v1661 = vtanh.pop %v1659
    %1664 = vrot.lane.b32.xlu0 %v1660, 64
    %v1665 = vpop.permute.xlu0 %1664
    %1666 = vrot.lane.b32.xlu0 %v1661, 64
    %v1667 = vpop.permute.xlu0 %1666
    %v1670 = vmul.f32 %v1620, %v1665
    %v1671 = vmul.f32 %v1635, %v1667
    %1674 = vrot.lane.b32.xlu0 %v1670, 32
    %v1675 = vpop.permute.xlu0 %1674
    %1676 = vrot.lane.b32.xlu0 %v1671, 32
    %v1677 = vpop.permute.xlu0 %1676
    %1680 = vst.msk [vmem:[#allocation3 + $0x4] sm:$0x1] %vm223, %v1675
    %1681 = vst.msk [vmem:[#allocation3 + $0xc] sm:$0x1] %vm223, %v1677
    %v1682 = vld [vmem:[#allocation2 + $0x5] sm:$0x1]
    %v1683 = vld [vmem:[#allocation2 + $0xd] sm:$0x1]
    %v1684 = vrot.slane %v1671, 7
    %v1685 = vsel %vm229, %v1684, %v1670
    %1686 = vrot.lane.b32.xlu0 %v1685, 32
    %v1687 = vpop.permute.xlu0 %1686
    %v1688 = vsel %vm111, %v1687, 0
    %1690 = vmatpush.msra.mxu0 0.0
    %1691 = vmatpush.msra.mxu0 0.0
    %1692 = vmatpush.msra.mxu0 0.0
    %1693 = vmatpush.msra.mxu0 0.0
    %1694 = vmatpush.msra.mxu0 0.0
    %1695 = vmatpush.msra.mxu0 0.0
    %1696 = vmatpush.msra.mxu0 0.0
    %1697 = vmatpush.msra.mxu0 0.0
    %1698 = vmatpush.msra.mxu0 0.0
    %1699 = vmatpush.msra.mxu0 0.0
    %1700 = vmatpush.msra.mxu0 0.0
    %1701 = vmatpush.msra.mxu0 0.0
    %1702 = vmatpush.msra.mxu0 %v1097
    %1703 = vmatpush.msra.mxu0 %v1096
    %1704 = vmatpush.msra.mxu0 %v1095
    %1705 = vmatpush.msra.mxu0 %v1094
    %1706 = vmatmul.f32.gmra.mxu0 %v1688
    %v1707 = vpop.f32.mrf.mxu0
    %v1708 = vadd.f32 0.0, %v1707
    %1709 = vdwg.mxu0
    %v1711 = vrot.slane %v1708, 1
    %v1714 = vadd.f32 %v1682, %v1708
    %v1715 = vadd.f32 %v1683, %v1711
    %v1716 = vxor.u32 %v1714, 2147483648
    %v1717 = vxor.u32 %v1715, 2147483648
    %v1718 = vmul.f32 %v1716, 1.442695
    %v1719 = vpow.pop %v1718
    %v1720 = vmul.f32 %v1717, 1.442695
    %v1721 = vpow.pop %v1720
    %v1722 = vadd.f32 %v1719, 1.0
    %v1723 = vadd.f32 %v1721, 1.0
    %v1724 = vrcp.pop %v1722
    %v1725 = vmul.f32 %v1722, %v1724
    %v1726 = vsub.f32 1.0, %v1725
    %v1727 = vmul.f32 %v1724, %v1726
    %v1728 = vadd.f32 %v1724, %v1727
    %vm1729 = vweird.f32 %v1722
    %vm1730 = vweird.f32 %v1724
    %vm1731 = vmor %vm1729, %vm1730
    %v1732 = vsel %vm1731, %v1724, %v1728
    %v1733 = vand.u32 2147483647, %v1722
    %vm1734 = vcmp.eq.f32.partialorder %v1733, 8.507059e+37
    %v1735 = vand.u32 %v1722, 2147483648
    %v1736 = vor.u32 1.1754944e-38, %v1735
    %v1737 = vsel %vm1734, %v1736, %v1732
    %v1738 = vmul.f32 1.0, %v1737
    %v1739 = vrcp.pop %v1723
    %v1740 = vmul.f32 %v1723, %v1739
    %v1741 = vsub.f32 1.0, %v1740
    %v1742 = vmul.f32 %v1739, %v1741
    %v1743 = vadd.f32 %v1739, %v1742
    %vm1744 = vweird.f32 %v1723
    %vm1745 = vweird.f32 %v1739
    %vm1746 = vmor %vm1744, %vm1745
    %v1747 = vsel %vm1746, %v1739, %v1743
    %v1748 = vand.u32 2147483647, %v1723
    %vm1749 = vcmp.eq.f32.partialorder %v1748, 8.507059e+37
    %v1750 = vand.u32 %v1723, 2147483648
    %v1751 = vor.u32 1.1754944e-38, %v1750
    %v1752 = vsel %vm1749, %v1751, %v1747
    %v1753 = vmul.f32 1.0, %v1752
    %v1754 = vtanh.pop %v1714
    %v1755 = vtanh.pop %v1715
    %v1756 = vmul.f32 %v1738, %v1658
    %v1757 = vmul.f32 %v1753, %v1659
    %1760 = vrot.lane.b32.xlu0 %v1754, 64
    %v1761 = vpop.permute.xlu0 %1760
    %1762 = vrot.lane.b32.xlu0 %v1755, 64
    %v1763 = vpop.permute.xlu0 %1762
    %v1766 = vmul.f32 %v1738, %v1761
    %v1767 = vmul.f32 %v1753, %v1763
    %1770 = vrot.lane.b32.xlu0 %v1766, 32
    %v1771 = vpop.permute.xlu0 %1770
    %1772 = vrot.lane.b32.xlu0 %v1767, 32
    %v1773 = vpop.permute.xlu0 %1772
    %v1776 = vadd.f32 %v1756, %v1771
    %v1777 = vadd.f32 %v1757, %v1773
    %v1778 = vtanh.pop %v1776
    %v1779 = vtanh.pop %v1777
    %1782 = vrot.lane.b32.xlu0 %v1778, 64
    %v1783 = vpop.permute.xlu0 %1782
    %1784 = vrot.lane.b32.xlu0 %v1779, 64
    %v1785 = vpop.permute.xlu0 %1784
    %v1788 = vmul.f32 %v1738, %v1783
    %v1789 = vmul.f32 %v1753, %v1785
    %1792 = vrot.lane.b32.xlu0 %v1788, 32
    %v1793 = vpop.permute.xlu0 %1792
    %1794 = vrot.lane.b32.xlu0 %v1789, 32
    %v1795 = vpop.permute.xlu0 %1794
    %1798 = vst.msk [vmem:[#allocation3 + $0x5] sm:$0x1] %vm223, %v1793
    %1799 = vst.msk [vmem:[#allocation3 + $0xd] sm:$0x1] %vm223, %v1795
    %v1800 = vld [vmem:[#allocation2 + $0x6] sm:$0x1]
    %v1801 = vld [vmem:[#allocation2 + $0xe] sm:$0x1]
    %v1802 = vrot.slane %v1789, 7
    %v1803 = vsel %vm229, %v1802, %v1788
    %1804 = vrot.lane.b32.xlu0 %v1803, 32
    %v1805 = vpop.permute.xlu0 %1804
    %v1806 = vsel %vm111, %v1805, 0
    %1808 = vmatpush.msra.mxu0 0.0
    %1809 = vmatpush.msra.mxu0 0.0
    %1810 = vmatpush.msra.mxu0 0.0
    %1811 = vmatpush.msra.mxu0 0.0
    %1812 = vmatpush.msra.mxu0 0.0
    %1813 = vmatpush.msra.mxu0 0.0
    %1814 = vmatpush.msra.mxu0 0.0
    %1815 = vmatpush.msra.mxu0 0.0
    %1816 = vmatpush.msra.mxu0 0.0
    %1817 = vmatpush.msra.mxu0 0.0
    %1818 = vmatpush.msra.mxu0 0.0
    %1819 = vmatpush.msra.mxu0 0.0
    %1820 = vmatpush.msra.mxu0 %v1097
    %1821 = vmatpush.msra.mxu0 %v1096
    %1822 = vmatpush.msra.mxu0 %v1095
    %1823 = vmatpush.msra.mxu0 %v1094
    %1824 = vmatmul.f32.gmra.mxu0 %v1806
    %v1825 = vpop.f32.mrf.mxu0
    %v1826 = vadd.f32 0.0, %v1825
    %1827 = vdwg.mxu0
    %v1829 = vrot.slane %v1826, 1
    %v1832 = vadd.f32 %v1800, %v1826
    %v1833 = vadd.f32 %v1801, %v1829
    %v1834 = vxor.u32 %v1832, 2147483648
    %v1835 = vxor.u32 %v1833, 2147483648
    %v1836 = vmul.f32 %v1834, 1.442695
    %v1837 = vpow.pop %v1836
    %v1838 = vmul.f32 %v1835, 1.442695
    %v1839 = vpow.pop %v1838
    %v1840 = vadd.f32 %v1837, 1.0
    %v1841 = vadd.f32 %v1839, 1.0
    %v1842 = vrcp.pop %v1840
    %v1843 = vmul.f32 %v1840, %v1842
    %v1844 = vsub.f32 1.0, %v1843
    %v1845 = vmul.f32 %v1842, %v1844
    %v1846 = vadd.f32 %v1842, %v1845
    %vm1847 = vweird.f32 %v1840
    %vm1848 = vweird.f32 %v1842
    %vm1849 = vmor %vm1847, %vm1848
    %v1850 = vsel %vm1849, %v1842, %v1846
    %v1851 = vand.u32 2147483647, %v1840
    %vm1852 = vcmp.eq.f32.partialorder %v1851, 8.507059e+37
    %v1853 = vand.u32 %v1840, 2147483648
    %v1854 = vor.u32 1.1754944e-38, %v1853
    %v1855 = vsel %vm1852, %v1854, %v1850
    %v1856 = vmul.f32 1.0, %v1855
    %v1857 = vrcp.pop %v1841
    %v1858 = vmul.f32 %v1841, %v1857
    %v1859 = vsub.f32 1.0, %v1858
    %v1860 = vmul.f32 %v1857, %v1859
    %v1861 = vadd.f32 %v1857, %v1860
    %vm1862 = vweird.f32 %v1841
    %vm1863 = vweird.f32 %v1857
    %vm1864 = vmor %vm1862, %vm1863
    %v1865 = vsel %vm1864, %v1857, %v1861
    %v1866 = vand.u32 2147483647, %v1841
    %vm1867 = vcmp.eq.f32.partialorder %v1866, 8.507059e+37
    %v1868 = vand.u32 %v1841, 2147483648
    %v1869 = vor.u32 1.1754944e-38, %v1868
    %v1870 = vsel %vm1867, %v1869, %v1865
    %v1871 = vmul.f32 1.0, %v1870
    %v1872 = vtanh.pop %v1832
    %v1873 = vtanh.pop %v1833
    %v1874 = vmul.f32 %v1856, %v1776
    %v1875 = vmul.f32 %v1871, %v1777
    %1878 = vrot.lane.b32.xlu0 %v1872, 64
    %v1879 = vpop.permute.xlu0 %1878
    %1880 = vrot.lane.b32.xlu0 %v1873, 64
    %v1881 = vpop.permute.xlu0 %1880
    %v1884 = vmul.f32 %v1856, %v1879
    %v1885 = vmul.f32 %v1871, %v1881
    %1888 = vrot.lane.b32.xlu0 %v1884, 32
    %v1889 = vpop.permute.xlu0 %1888
    %1890 = vrot.lane.b32.xlu0 %v1885, 32
    %v1891 = vpop.permute.xlu0 %1890
    %v1894 = vadd.f32 %v1874, %v1889
    %v1895 = vadd.f32 %v1875, %v1891
    %v1896 = vtanh.pop %v1894
    %v1897 = vtanh.pop %v1895
    %1900 = vrot.lane.b32.xlu0 %v1896, 64
    %v1901 = vpop.permute.xlu0 %1900
    %1902 = vrot.lane.b32.xlu0 %v1897, 64
    %v1903 = vpop.permute.xlu0 %1902
    %v1906 = vmul.f32 %v1856, %v1901
    %v1907 = vmul.f32 %v1871, %v1903
    %1910 = vrot.lane.b32.xlu0 %v1906, 32
    %v1911 = vpop.permute.xlu0 %1910
    %1912 = vrot.lane.b32.xlu0 %v1907, 32
    %v1913 = vpop.permute.xlu0 %1912
    %1916 = vst.msk [vmem:[#allocation3 + $0x6] sm:$0x1] %vm223, %v1911
    %1917 = vst.msk [vmem:[#allocation3 + $0xe] sm:$0x1] %vm223, %v1913
    %v1918 = vld [vmem:[#allocation2 + $0x7] sm:$0x1]
    %v1919 = vld [vmem:[#allocation2 + $0xf] sm:$0x1]
    %v1920 = vrot.slane %v1907, 7
    %v1921 = vsel %vm229, %v1920, %v1906
    %1922 = vrot.lane.b32.xlu0 %v1921, 32
    %v1923 = vpop.permute.xlu0 %1922
    %v1924 = vsel %vm111, %v1923, 0
    %1926 = vmatpush.msra.mxu0 0.0
    %1927 = vmatpush.msra.mxu0 0.0
    %1928 = vmatpush.msra.mxu0 0.0
    %1929 = vmatpush.msra.mxu0 0.0
    %1930 = vmatpush.msra.mxu0 0.0
    %1931 = vmatpush.msra.mxu0 0.0
    %1932 = vmatpush.msra.mxu0 0.0
    %1933 = vmatpush.msra.mxu0 0.0
    %1934 = vmatpush.msra.mxu0 0.0
    %1935 = vmatpush.msra.mxu0 0.0
    %1936 = vmatpush.msra.mxu0 0.0
    %1937 = vmatpush.msra.mxu0 0.0
    %1938 = vmatpush.msra.mxu0 %v1097
    %1939 = vmatpush.msra.mxu0 %v1096
    %1940 = vmatpush.msra.mxu0 %v1095
    %1941 = vmatpush.msra.mxu0 %v1094
    %1942 = vmatmul.f32.gmra.mxu0 %v1924
    %v1943 = vpop.f32.mrf.mxu0
    %v1944 = vadd.f32 0.0, %v1943
    %1945 = vdwg.mxu0
    %v1947 = vrot.slane %v1944, 1
    %v1950 = vadd.f32 %v1918, %v1944
    %v1951 = vadd.f32 %v1919, %v1947
    %v1952 = vxor.u32 %v1950, 2147483648
    %v1953 = vxor.u32 %v1951, 2147483648
    %v1954 = vmul.f32 %v1952, 1.442695
    %v1955 = vpow.pop %v1954
    %v1956 = vmul.f32 %v1953, 1.442695
    %v1957 = vpow.pop %v1956
    %v1958 = vadd.f32 %v1955, 1.0
    %v1959 = vadd.f32 %v1957, 1.0
    %v1960 = vrcp.pop %v1958
    %v1961 = vmul.f32 %v1958, %v1960
    %v1962 = vsub.f32 1.0, %v1961
    %v1963 = vmul.f32 %v1960, %v1962
    %v1964 = vadd.f32 %v1960, %v1963
    %vm1965 = vweird.f32 %v1958
    %vm1966 = vweird.f32 %v1960
    %vm1967 = vmor %vm1965, %vm1966
    %v1968 = vsel %vm1967, %v1960, %v1964
    %v1969 = vand.u32 2147483647, %v1958
    %vm1970 = vcmp.eq.f32.partialorder %v1969, 8.507059e+37
    %v1971 = vand.u32 %v1958, 2147483648
    %v1972 = vor.u32 1.1754944e-38, %v1971
    %v1973 = vsel %vm1970, %v1972, %v1968
    %v1974 = vmul.f32 1.0, %v1973
    %v1975 = vrcp.pop %v1959
    %v1976 = vmul.f32 %v1959, %v1975
    %v1977 = vsub.f32 1.0, %v1976
    %v1978 = vmul.f32 %v1975, %v1977
    %v1979 = vadd.f32 %v1975, %v1978
    %vm1980 = vweird.f32 %v1959
    %vm1981 = vweird.f32 %v1975
    %vm1982 = vmor %vm1980, %vm1981
    %v1983 = vsel %vm1982, %v1975, %v1979
    %v1984 = vand.u32 2147483647, %v1959
    %vm1985 = vcmp.eq.f32.partialorder %v1984, 8.507059e+37
    %v1986 = vand.u32 %v1959, 2147483648
    %v1987 = vor.u32 1.1754944e-38, %v1986
    %v1988 = vsel %vm1985, %v1987, %v1983
    %v1989 = vmul.f32 1.0, %v1988
    %v1990 = vtanh.pop %v1950
    %v1991 = vtanh.pop %v1951
    %v1992 = vmul.f32 %v1974, %v1894
    %v1993 = vmul.f32 %v1989, %v1895
    %1996 = vrot.lane.b32.xlu0 %v1990, 64
    %v1997 = vpop.permute.xlu0 %1996
    %1998 = vrot.lane.b32.xlu0 %v1991, 64
    %v1999 = vpop.permute.xlu0 %1998
    %v2002 = vmul.f32 %v1974, %v1997
    %v2003 = vmul.f32 %v1989, %v1999
    %2006 = vrot.lane.b32.xlu0 %v2002, 32
    %v2007 = vpop.permute.xlu0 %2006
    %2008 = vrot.lane.b32.xlu0 %v2003, 32
    %v2009 = vpop.permute.xlu0 %2008
    %v2012 = vadd.f32 %v1992, %v2007
    %v2013 = vadd.f32 %v1993, %v2009
    %v2014 = vtanh.pop %v2012
    %v2015 = vtanh.pop %v2013
    %2018 = vrot.lane.b32.xlu0 %v2014, 64
    %v2019 = vpop.permute.xlu0 %2018
    %2020 = vrot.lane.b32.xlu0 %v2015, 64
    %v2021 = vpop.permute.xlu0 %2020
    %v2024 = vmul.f32 %v1974, %v2019
    %v2025 = vmul.f32 %v1989, %v2021
    %2028 = vrot.lane.b32.xlu0 %v2024, 32
    %v2029 = vpop.permute.xlu0 %2028
    %2030 = vrot.lane.b32.xlu0 %v2025, 32
    %v2031 = vpop.permute.xlu0 %2030
    %2034 = vst.msk [vmem:[#allocation3 + $0x7] sm:$0x1] %vm223, %v2029
    %2035 = vst.msk [vmem:[#allocation3 + $0xf] sm:$0x1] %vm223, %v2031
    %v2036 = vld [vmem:[#allocation3] sm:$0xff]
    %v2037 = vld [vmem:[#allocation3 + $0x8] sm:$0xff]
    %v2038 = vld [vmem:[#allocation5] sm:$0xff]
    %v2039 = vld [vmem:[#allocation5 + $0x8] sm:$0xff]
    %v2040 = vld [vmem:[#allocation5 + $0x10] sm:$0xff]
    %v2041 = vld [vmem:[#allocation5 + $0x18] sm:$0xff]
    %v2042 = vld [vmem:[%s8] sm:$0x1]
    %v2044 = vperm.slane %v2042, 0
    %v2047 = vsel %vm111, %v2036, 0
    %v2050 = vsel %vm111, %v2037, 0
    %2052 = vmatpush.msra.mxu0 0.0
    %2053 = vmatpush.msra.mxu0 0.0
    %2054 = vmatpush.msra.mxu0 0.0
    %2055 = vmatpush.msra.mxu0 0.0
    %2056 = vmatpush.msra.mxu0 0.0
    %2057 = vmatpush.msra.mxu0 0.0
    %2058 = vmatpush.msra.mxu0 0.0
    %2059 = vmatpush.msra.mxu0 0.0
    %2060 = vmatpush.msra.mxu0 0.0
    %2061 = vmatpush.msra.mxu0 0.0
    %2062 = vmatpush.msra.mxu0 0.0
    %2063 = vmatpush.msra.mxu0 0.0
    %2064 = vmatpush.msra.mxu0 %v2041
    %2065 = vmatpush.msra.mxu0 %v2040
    %2066 = vmatpush.msra.mxu0 %v2039
    %2067 = vmatpush.msra.mxu0 %v2038
    %2068 = vmatmul.f32.gmra.mxu0 %v2047
    %v2069 = vpop.f32.mrf.mxu0
    %v2070 = vadd.f32 %v2044, %v2069
    %2071 = vmatmul.f32.gmra.mxu0 %v2050
    %v2072 = vpop.f32.mrf.mxu0
    %v2073 = vadd.f32 %v2044, %v2072
    %2074 = vdwg.mxu0
    %v2075 = vmax.f32 %v2070, 0.0
    %v2076 = vmax.f32 %v2073, 0.0
    %v2077 = vld [vmem:[%s9] sm:$0xff]
    %v2078 = vld [vmem:[%s9 + $0x8] sm:$0xff]
    %v2079 = vld [vmem:[%s9 + $0x10] sm:$0xff]
    %v2080 = vld [vmem:[%s9 + $0x18] sm:$0xff]
    %v2081 = vld [vmem:[%s9 + $0x20] sm:$0xff]
    %v2082 = vld [vmem:[%s9 + $0x28] sm:$0xff]
    %v2083 = vld [vmem:[%s9 + $0x30] sm:$0xff]
    %v2084 = vld [vmem:[%s9 + $0x38] sm:$0xff]
    %v2085 = vld [vmem:[%s10] sm:$0x1]
    %v2087 = vperm.slane %v2085, 0
    %vm2089 = vcmask 523264
    %v2091 = vsel %vm2089, %v2075, 0
    %v2094 = vsel %vm2089, %v2076, 0
    %2096 = vmatpush.msra.mxu0 0.0
    %2097 = vmatpush.msra.mxu0 0.0
    %2098 = vmatpush.msra.mxu0 0.0
    %2099 = vmatpush.msra.mxu0 0.0
    %2100 = vmatpush.msra.mxu0 0.0
    %2101 = vmatpush.msra.mxu0 0.0
    %2102 = vmatpush.msra.mxu0 0.0
    %2103 = vmatpush.msra.mxu0 0.0
    %2104 = vmatpush.msra.mxu0 %v2084
    %2105 = vmatpush.msra.mxu0 %v2083
    %2106 = vmatpush.msra.mxu0 %v2082
    %2107 = vmatpush.msra.mxu0 %v2081
    %2108 = vmatpush.msra.mxu0 %v2080
    %2109 = vmatpush.msra.mxu0 %v2079
    %2110 = vmatpush.msra.mxu0 %v2078
    %2111 = vmatpush.msra.mxu0 %v2077
    %2112 = vmatmul.f32.gmra.mxu0 %v2091
    %v2113 = vpop.f32.mrf.mxu0
    %v2114 = vadd.f32 %v2087, %v2113
    %2115 = vmatmul.f32.gmra.mxu0 %v2094
    %v2116 = vpop.f32.mrf.mxu0
    %v2117 = vadd.f32 %v2087, %v2116
    %2118 = vdwg.mxu0
    %v2119 = vld [vmem:[%s11] sm:$0xff]
    %v2120 = vld [vmem:[%s11 + $0x8] sm:$0xff]
    %v2121 = vld [vmem:[%s11 + $0x10] sm:$0xff]
    %v2122 = vld [vmem:[%s11 + $0x18] sm:$0xff]
    %v2123 = vld [vmem:[#allocation4] sm:$0x1]
    %v2125 = vperm.slane %v2123, 0
    %v2128 = vsel %vm111, %v2114, 0
    %v2131 = vsel %vm111, %v2117, 0
    %2133 = vmatpush.msra.mxu0 0.0
    %2134 = vmatpush.msra.mxu0 0.0
    %2135 = vmatpush.msra.mxu0 0.0
    %2136 = vmatpush.msra.mxu0 0.0
    %2137 = vmatpush.msra.mxu0 0.0
    %2138 = vmatpush.msra.mxu0 0.0
    %2139 = vmatpush.msra.mxu0 0.0
    %2140 = vmatpush.msra.mxu0 0.0
    %2141 = vmatpush.msra.mxu0 0.0
    %2142 = vmatpush.msra.mxu0 0.0
    %2143 = vmatpush.msra.mxu0 0.0
    %2144 = vmatpush.msra.mxu0 0.0
    %2145 = vmatpush.msra.mxu0 %v2122
    %2146 = vmatpush.msra.mxu0 %v2121
    %2147 = vmatpush.msra.mxu0 %v2120
    %2148 = vmatpush.msra.mxu0 %v2119
    %2149 = vmatmul.f32.gmra.mxu0 %v2128
    %v2150 = vpop.f32.mrf.mxu0
    %v2151 = vadd.f32 %v2125, %v2150
    %2152 = vmatmul.f32.gmra.mxu0 %v2131
    %v2153 = vpop.f32.mrf.mxu0
    %v2154 = vadd.f32 %v2125, %v2153
    %2155 = vdwg.mxu0
    %vm2156 = vcmask 7168
    %2157 = vst.msk [vmem:[%s13] sm:$0xff] %vm2156, %v2151
    %2158 = vst.msk [vmem:[%s13 + $0x8] sm:$0xff] %vm2156, %v2154
    // Predicated region
    $region58: #{tpu_custom_call.1} parent=1 // pred_check
      _
    $region59: #{tpu_custom_call.1} parent=1 // pred_check_branch
      %2160 = sbr.rel (0) target = $region61
    $region60: #{tpu_custom_call.1} parent=1 // pred_region
      _
    $region61: #{tpu_custom_call.1} parent=1 // pred_fallthru
      _
    // Predicated region
    $region62: #{tpu_custom_call.1} parent=1 // pred_check
      _
    $region63: #{tpu_custom_call.1} parent=1 // pred_check_branch
      %2162 = sbr.rel (0) target = $region65
    $region64: #{tpu_custom_call.1} parent=1 // pred_region
      _
    $region65: #{tpu_custom_call.1} parent=1 // pred_fallthru
      _
    %2163 = vsyncpa [#allocation6], 1

</llo_original>
